<compile_context>
chip_gen: v6e
topology: v6e:2x2x1
jax: 0.10.0
libtpu: 0.0.40
codegen_flags: <defaults>
</compile_context>

<pallas_src>
import jax
import jax.numpy as jnp
from jax.experimental import pallas as pl
from jax.experimental.pallas import tpu as pltpu


def _round_up(x, m):
    return ((x + m - 1) // m) * m


def _vmem_capacity_bytes(default=64 << 20):
    """Physical VMEM per core; conservative 64 MiB fallback (covers v7x)."""
    try:
        cap = getattr(pltpu.get_tpu_info(), "vmem_capacity_bytes", None)
        if cap:
            return int(cap)
    except Exception:
        pass
    return default


def _head_kernel(x_ref, arg_ref, w1_ref, b1_ref, w2_ref, b2_ref,
                 w3_ref, b3_ref, o_ref):
    """One (tm, .) row tile:  y = [tanh(xW1+b1) | tanh(aW2+b2)] @ W3 + b3."""
    cdt = w1_ref.dtype
    # dense_proj + tanh (dropout is identity in eval mode).  MXU matmuls
    # accumulate in f32; bias-add + tanh stay in f32 on VPU/EUP (v5e has no
    # bf16 VPU).  The activation cast happens here (not in the wrapper).
    xp = jnp.tanh(
        jnp.dot(x_ref[...].astype(cdt), w1_ref[...],
                preferred_element_type=jnp.float32) + b1_ref[...])
    # arg_dense + tanh
    ap = jnp.tanh(
        jnp.dot(arg_ref[...].astype(cdt), w2_ref[...],
                preferred_element_type=jnp.float32) + b2_ref[...])
    # out_proj over the concatenation.  Both halves are lane-aligned
    # (multiples of 128), so a single stacked-K dot replaces two dots + add.
    cat = jnp.concatenate([xp.astype(cdt), ap.astype(cdt)], axis=-1)
    y = jnp.dot(cat, w3_ref[...], preferred_element_type=jnp.float32) + b3_ref[...]
    o_ref[...] = y.astype(o_ref.dtype)


def arg_classification_head(x, arg_feature, params, *,
                            tm=512, compute_dtype=jnp.bfloat16,
                            out_dtype=None, vmem_budget_bytes=None):
    """x: (B, S, hidden), arg_feature: (B, S, arg_feat) -> (B, S, num_labels).

    tm: target row tile (512 default; the shrink loop and the >=2-grid-steps
        cap adjust it).  compute_dtype: matmul operand dtype (None -> keep the
        input dtype, e.g. for exact f32 checks).  out_dtype: kernel output
        dtype (None -> x.dtype); pass jnp.bfloat16 if the consumer tolerates it
        to halve output writes.
    """
    B, S, H = x.shape
    A = arg_feature.shape[-1]
    M = B * S

    w_proj, b_proj = params["dense_proj"]      # (H, R), (R,)
    w_arg, b_arg = params["arg_dense"]         # (A, A), (A,)
    w_out, b_out = params["out_proj"]          # (R + A, L), (L,)
    R = w_proj.shape[1]
    L = w_out.shape[1]

    out_dtype = x.dtype if out_dtype is None else out_dtype
    cdt = x.dtype if compute_dtype is None else compute_dtype
    cb = jnp.dtype(cdt).itemsize
    xb = jnp.dtype(x.dtype).itemsize
    ab = jnp.dtype(arg_feature.dtype).itemsize
    ob = jnp.dtype(out_dtype).itemsize

    # Only weight *output* dims get lane-padding to 128 (exact: padded rows/
    # cols and bias entries are zero, tanh(0) = 0, extra output columns are
    # sliced off).  Activation K-dims stay unpadded -> minimal HBM traffic.
    Rp, Ap, Lp = (_round_up(d, 128) for d in (R, A, L))

    w1 = jnp.pad(w_proj.astype(cdt), ((0, 0), (0, Rp - R)))        # (H, Rp)
    w2 = jnp.pad(w_arg.astype(cdt), ((0, 0), (0, Ap - A)))         # (A, Ap)
    w3 = jnp.concatenate([                                         # (Rp+Ap, Lp)
        jnp.pad(w_out[:R, :].astype(cdt), ((0, Rp - R), (0, Lp - L))),
        jnp.pad(w_out[R:, :].astype(cdt), ((0, Ap - A), (0, Lp - L))),
    ], axis=0)
    b1 = jnp.pad(b_proj.astype(jnp.float32), (0, Rp - R)).reshape(1, Rp)
    b2 = jnp.pad(b_arg.astype(jnp.float32), (0, Ap - A)).reshape(1, Ap)
    b3 = jnp.pad(b_out.astype(jnp.float32), (0, Lp - L)).reshape(1, Lp)

    # Activations: pure reshape, no pad / astype copies.
    x2 = x.reshape(M, H)
    a2 = arg_feature.reshape(M, A)

    # TODO(synk): dropout (hidden_dropout_prob) is omitted -> eval-mode identity.

    # ---- VMEM-aware row-tile selection ------------------------------------
    vmem_cap = _vmem_capacity_bytes()
    if vmem_budget_bytes is None:
        vmem_budget_bytes = max(16 << 20,
                                min(int(0.7 * vmem_cap), vmem_cap - (16 << 20)))

    w_bytes = (H * Rp + A * Ap + (Rp + Ap) * Lp) * cb + (Rp + Ap + Lp) * 4

    def vmem_need(t):
        io = 2 * t * (H * xb + A * ab + Lp * ob)       # double-buffered I/O tiles
        inter = t * ((Rp + Ap) * (4 + cb) + Lp * 4)    # xp/ap (f32), cat, y
        return io + inter + w_bytes + (4 << 20)        # + compiler headroom

    tm = max(8, (min(tm, _round_up(M, 8)) // 8) * 8)
    # Keep >= 2 grid steps so v7x's two TensorCores both get row tiles (and the
    # pipeline has something to overlap); ~0.35 us extra per step elsewhere.
    if M > 8:
        tm = min(tm, _round_up(pl.cdiv(M, 2), 8))
    while tm > 8 and vmem_need(tm) > vmem_budget_bytes:
        tm //= 2
    tm = max(8, (tm // 8) * 8)

    grid_m = pl.cdiv(M, tm)   # ragged tail: OOB reads allowed, stores masked
    vmem_limit = int(min(vmem_cap - (12 << 20),
                         max(32 << 20, 2 * vmem_need(tm))))

    def run(single_buffer_weights):
        wkw = {"pipeline_mode": pl.Buffered(1)} if single_buffer_weights else {}

        def wspec(shape):
            # Grid-invariant weights/biases; single-buffer when supported.
            return pl.BlockSpec(shape, lambda i: (0, 0), **wkw)

        return pl.pallas_call(
            _head_kernel,
            out_shape=jax.ShapeDtypeStruct((M, Lp), out_dtype),
            grid_spec=pltpu.PrefetchScalarGridSpec(
                num_scalar_prefetch=0,
                grid=(grid_m,),
                in_specs=[
                    pl.BlockSpec((tm, H), lambda i: (i, 0)),   # x rows (K unpadded)
                    pl.BlockSpec((tm, A), lambda i: (i, 0)),   # arg rows
                    wspec((H, Rp)),         # W_proj
                    wspec((1, Rp)),         # b_proj
                    wspec((A, Ap)),         # W_arg
                    wspec((1, Ap)),         # b_arg
                    wspec((Rp + Ap, Lp)),   # W_out (stacked for fused dot)
                    wspec((1, Lp)),         # b_out
                ],
                out_specs=pl.BlockSpec((tm, Lp), lambda i: (i, 0)),
            ),
            compiler_params=pltpu.CompilerParams(
                dimension_semantics=("parallel",),   # row tiles shard across v7x TCs
                vmem_limit_bytes=vmem_limit),
        )(x2, a2, w1, b1, w2, b2, w3, b3)

    try:
        out = run(True)            # single-buffered grid-invariant weights
    except Exception:              # Pallas version without pipeline_mode support
        out = run(False)

    return out[:, :L].reshape(B, S, L)


def init_params(key, hidden_size, arg_feature_size, sentence_repr_size, num_labels):
    ks = jax.random.split(key, 6)
    scale = 0.02
    return {
        "dense_proj": (
            scale * jax.random.normal(ks[0], (hidden_size, sentence_repr_size), jnp.float32),
            scale * jax.random.normal(ks[1], (sentence_repr_size,), jnp.float32),
        ),
        "arg_dense": (
            scale * jax.random.normal(ks[2], (arg_feature_size, arg_feature_size), jnp.float32),
            scale * jax.random.normal(ks[3], (arg_feature_size,), jnp.float32),
        ),
        "out_proj": (
            scale * jax.random.normal(ks[4], (sentence_repr_size + arg_feature_size, num_labels), jnp.float32),
            scale * jax.random.normal(ks[5], (num_labels,), jnp.float32),
        ),
    }


def reference_forward(x, arg_feature, params):
    w1, b1 = params["dense_proj"]
    w2, b2 = params["arg_dense"]
    w3, b3 = params["out_proj"]
    xp = jnp.tanh(x @ w1 + b1)
    ap = jnp.tanh(arg_feature @ w2 + b2)
    cat = jnp.concatenate([xp, ap], axis=-1)
    return cat @ w3 + b3


if __name__ == "__main__":
    hidden_size = 32
    arg_feature_size = 16
    sentence_repr_size = 24
    num_labels = 4

    key = jax.random.PRNGKey(0)
    kx, ka, kp = jax.random.split(key, 3)
    params = init_params(kp, hidden_size, arg_feature_size, sentence_repr_size, num_labels)

    # Primary shape (even M) --------------------------------------------------
    B, S = 2, 8
    x = jax.random.normal(kx, (B, S, hidden_size), jnp.float32)
    arg_feature = jax.random.normal(ka, (B, S, arg_feature_size), jnp.float32)
    y_ref = reference_forward(x, arg_feature, params)

    # bf16 MXU operands, f32 accumulation / tanh.
    y_bf16 = jax.block_until_ready(
        arg_classification_head(x, arg_feature, params, compute_dtype=jnp.bfloat16))
    assert y_bf16.shape == (B, S, num_labels)
    assert jnp.allclose(y_bf16, y_ref, atol=3e-2, rtol=3e-2), "bf16 path mismatch vs reference"

    # Exactness check: full f32 path must match the reference tightly.
    y_f32 = jax.block_until_ready(
        arg_classification_head(x, arg_feature, params, compute_dtype=None))
    assert jnp.allclose(y_f32, y_ref, atol=1e-5, rtol=1e-5), "f32 path mismatch vs reference"

    # Ragged-M shape (exercises the masked last tile: M = 15, tm = 8) --------
    B2, S2 = 3, 5
    x2 = jax.random.normal(jax.random.PRNGKey(1), (B2, S2, hidden_size), jnp.float32)
    a2 = jax.random.normal(jax.random.PRNGKey(2), (B2, S2, arg_feature_size), jnp.float32)
    y2_ref = reference_forward(x2, a2, params)
    y2 = jax.block_until_ready(
        arg_classification_head(x2, a2, params, compute_dtype=None))
    assert y2.shape == (B2, S2, num_labels)
    assert jnp.allclose(y2, y2_ref, atol=1e-5, rtol=1e-5), "ragged-tail path mismatch vs reference"

    print("KERNEL_OK")
</pallas_src>

<mosaic_0001>
module attributes {stable_mosaic.version = 11 : i64} {
  func.func @_head_kernel(%arg0: i32, %arg1: memref<8x32xf32, #tpu.memory_space<vmem>>, %arg2: memref<8x16xf32, #tpu.memory_space<vmem>>, %arg3: memref<32x128xbf16, #tpu.memory_space<vmem>>, %arg4: memref<1x128xf32, #tpu.memory_space<vmem>>, %arg5: memref<16x128xbf16, #tpu.memory_space<vmem>>, %arg6: memref<1x128xf32, #tpu.memory_space<vmem>>, %arg7: memref<256x128xbf16, #tpu.memory_space<vmem>>, %arg8: memref<1x128xf32, #tpu.memory_space<vmem>>, %arg9: memref<8x128xf32, #tpu.memory_space<vmem>>) attributes {dimension_semantics = [#tpu.dimension_semantics<parallel>], iteration_bounds = array<i64: 2>, scalar_prefetch = 0 : i64, scratch_operands = 0 : i64, tpu.core_type = #tpu.core_type<tc>, window_params = [{transform_indices = @transform_0, window_bounds = array<i64: 8, 32>}, {transform_indices = @transform_1, window_bounds = array<i64: 8, 16>}, {pipeline_mode = #tpu.pipeline_mode<synchronous>, transform_indices = @transform_2, window_bounds = array<i64: 32, 128>}, {pipeline_mode = #tpu.pipeline_mode<synchronous>, transform_indices = @transform_3, window_bounds = array<i64: 1, 128>}, {pipeline_mode = #tpu.pipeline_mode<synchronous>, transform_indices = @transform_4, window_bounds = array<i64: 16, 128>}, {pipeline_mode = #tpu.pipeline_mode<synchronous>, transform_indices = @transform_5, window_bounds = array<i64: 1, 128>}, {pipeline_mode = #tpu.pipeline_mode<synchronous>, transform_indices = @transform_6, window_bounds = array<i64: 256, 128>}, {pipeline_mode = #tpu.pipeline_mode<synchronous>, transform_indices = @transform_7, window_bounds = array<i64: 1, 128>}, {transform_indices = @transform_8, window_bounds = array<i64: 8, 128>}]} {
    %c0 = arith.constant 0 : index
    %c0_0 = arith.constant 0 : index
    %0 = vector.load %arg1[%c0, %c0_0] : memref<8x32xf32, #tpu.memory_space<vmem>>, vector<8x32xf32>
    %1 = arith.truncf %0 : vector<8x32xf32> to vector<8x32xbf16>
    %c0_1 = arith.constant 0 : index
    %c0_2 = arith.constant 0 : index
    %2 = vector.load %arg3[%c0_1, %c0_2] : memref<32x128xbf16, #tpu.memory_space<vmem>>, vector<32x128xbf16>
    %cst = arith.constant dense<0.000000e+00> : vector<8x128xf32>
    %3 = tpu.matmul %1, %2, %cst {dimension_numbers = #tpu.dot_dimension_numbers<[1], [0], [0], [1], [0, 0, 1, 1], [], []>} : vector<8x32xbf16>, vector<32x128xbf16>, vector<8x128xf32> -> vector<8x128xf32>
    %c0_3 = arith.constant 0 : index
    %c0_4 = arith.constant 0 : index
    %4 = vector.load %arg4[%c0_3, %c0_4] : memref<1x128xf32, #tpu.memory_space<vmem>>, vector<1x128xf32>
    %5 = vector.broadcast %4 : vector<1x128xf32> to vector<8x128xf32>
    %6 = arith.addf %3, %5 : vector<8x128xf32>
    %7 = math.tanh %6 : vector<8x128xf32>
    %c0_5 = arith.constant 0 : index
    %c0_6 = arith.constant 0 : index
    %8 = vector.load %arg2[%c0_5, %c0_6] : memref<8x16xf32, #tpu.memory_space<vmem>>, vector<8x16xf32>
    %9 = arith.truncf %8 : vector<8x16xf32> to vector<8x16xbf16>
    %c0_7 = arith.constant 0 : index
    %c0_8 = arith.constant 0 : index
    %10 = vector.load %arg5[%c0_7, %c0_8] : memref<16x128xbf16, #tpu.memory_space<vmem>>, vector<16x128xbf16>
    %cst_9 = arith.constant dense<0.000000e+00> : vector<8x128xf32>
    %11 = tpu.matmul %9, %10, %cst_9 {dimension_numbers = #tpu.dot_dimension_numbers<[1], [0], [0], [1], [0, 0, 1, 1], [], []>} : vector<8x16xbf16>, vector<16x128xbf16>, vector<8x128xf32> -> vector<8x128xf32>
    %c0_10 = arith.constant 0 : index
    %c0_11 = arith.constant 0 : index
    %12 = vector.load %arg6[%c0_10, %c0_11] : memref<1x128xf32, #tpu.memory_space<vmem>>, vector<1x128xf32>
    %13 = vector.broadcast %12 : vector<1x128xf32> to vector<8x128xf32>
    %14 = arith.addf %11, %13 : vector<8x128xf32>
    %15 = math.tanh %14 : vector<8x128xf32>
    %16 = arith.truncf %7 : vector<8x128xf32> to vector<8x128xbf16>
    %17 = arith.truncf %15 : vector<8x128xf32> to vector<8x128xbf16>
    %18 = tpu.concatenate %16, %17 in 1 : vector<8x128xbf16>, vector<8x128xbf16> -> vector<8x256xbf16>
    %c0_12 = arith.constant 0 : index
    %c0_13 = arith.constant 0 : index
    %19 = vector.load %arg7[%c0_12, %c0_13] : memref<256x128xbf16, #tpu.memory_space<vmem>>, vector<256x128xbf16>
    %cst_14 = arith.constant dense<0.000000e+00> : vector<8x128xf32>
    %20 = tpu.matmul %18, %19, %cst_14 {dimension_numbers = #tpu.dot_dimension_numbers<[1], [0], [0], [1], [0, 0, 1, 1], [], []>} : vector<8x256xbf16>, vector<256x128xbf16>, vector<8x128xf32> -> vector<8x128xf32>
    %c0_15 = arith.constant 0 : index
    %c0_16 = arith.constant 0 : index
    %21 = vector.load %arg8[%c0_15, %c0_16] : memref<1x128xf32, #tpu.memory_space<vmem>>, vector<1x128xf32>
    %22 = vector.broadcast %21 : vector<1x128xf32> to vector<8x128xf32>
    %23 = arith.addf %20, %22 : vector<8x128xf32>
    %c0_17 = arith.constant 0 : index
    %c0_18 = arith.constant 0 : index
    %24 = vector.load %arg9[%c0_17, %c0_18] : memref<8x128xf32, #tpu.memory_space<vmem>>, vector<8x128xf32>
    tpu.vector_store %arg9[%c0_17, %c0_18], %23 {strides = array<i32>} : memref<8x128xf32, #tpu.memory_space<vmem>>, vector<8x128xf32>,
    return
  }
  func.func @transform_0(%arg0: i32) -> (i32, i32) {
    %c0_i32 = arith.constant 0 : i32
    %c0_i32_0 = arith.constant 0 : i32
    return %arg0, %c0_i32 : i32, i32
  }
  func.func @transform_1(%arg0: i32) -> (i32, i32) {
    %c0_i32 = arith.constant 0 : i32
    %c0_i32_0 = arith.constant 0 : i32
    return %arg0, %c0_i32 : i32, i32
  }
  func.func @transform_2(%arg0: i32) -> (i32, i32) {
    %c0_i32 = arith.constant 0 : i32
    %c0_i32_0 = arith.constant 0 : i32
    %c0_i32_1 = arith.constant 0 : i32
    return %c0_i32, %c0_i32_0 : i32, i32
  }
  func.func @transform_3(%arg0: i32) -> (i32, i32) {
    %c0_i32 = arith.constant 0 : i32
    %c0_i32_0 = arith.constant 0 : i32
    %c0_i32_1 = arith.constant 0 : i32
    return %c0_i32, %c0_i32_0 : i32, i32
  }
  func.func @transform_4(%arg0: i32) -> (i32, i32) {
    %c0_i32 = arith.constant 0 : i32
    %c0_i32_0 = arith.constant 0 : i32
    %c0_i32_1 = arith.constant 0 : i32
    return %c0_i32, %c0_i32_0 : i32, i32
  }
  func.func @transform_5(%arg0: i32) -> (i32, i32) {
    %c0_i32 = arith.constant 0 : i32
    %c0_i32_0 = arith.constant 0 : i32
    %c0_i32_1 = arith.constant 0 : i32
    return %c0_i32, %c0_i32_0 : i32, i32
  }
  func.func @transform_6(%arg0: i32) -> (i32, i32) {
    %c0_i32 = arith.constant 0 : i32
    %c0_i32_0 = arith.constant 0 : i32
    %c0_i32_1 = arith.constant 0 : i32
    return %c0_i32, %c0_i32_0 : i32, i32
  }
  func.func @transform_7(%arg0: i32) -> (i32, i32) {
    %c0_i32 = arith.constant 0 : i32
    %c0_i32_0 = arith.constant 0 : i32
    %c0_i32_1 = arith.constant 0 : i32
    return %c0_i32, %c0_i32_0 : i32, i32
  }
  func.func @transform_8(%arg0: i32) -> (i32, i32) {
    %c0_i32 = arith.constant 0 : i32
    %c0_i32_0 = arith.constant 0 : i32
    return %arg0, %c0_i32 : i32, i32
  }
}

module attributes {stable_mosaic.version = 11 : i64} {
  func.func @_head_kernel(%arg0: i32, %arg1: memref<8x32xf32, #tpu.memory_space<vmem>>, %arg2: memref<8x16xf32, #tpu.memory_space<vmem>>, %arg3: memref<32x128xbf16, #tpu.memory_space<vmem>>, %arg4: memref<1x128xf32, #tpu.memory_space<vmem>>, %arg5: memref<16x128xbf16, #tpu.memory_space<vmem>>, %arg6: memref<1x128xf32, #tpu.memory_space<vmem>>, %arg7: memref<256x128xbf16, #tpu.memory_space<vmem>>, %arg8: memref<1x128xf32, #tpu.memory_space<vmem>>, %arg9: memref<8x128xf32, #tpu.memory_space<vmem>>) attributes {dimension_semantics = [#tpu.dimension_semantics<parallel>], iteration_bounds = array<i64: 2>, scalar_prefetch = 0 : i64, scratch_operands = 0 : i64, tpu.core_type = #tpu.core_type<tc>, window_params = [{transform_indices = @transform_0, window_bounds = array<i64: 8, 32>}, {transform_indices = @transform_1, window_bounds = array<i64: 8, 16>}, {pipeline_mode = #tpu.pipeline_mode<synchronous>, transform_indices = @transform_2, window_bounds = array<i64: 32, 128>}, {pipeline_mode = #tpu.pipeline_mode<synchronous>, transform_indices = @transform_3, window_bounds = array<i64: 1, 128>}, {pipeline_mode = #tpu.pipeline_mode<synchronous>, transform_indices = @transform_4, window_bounds = array<i64: 16, 128>}, {pipeline_mode = #tpu.pipeline_mode<synchronous>, transform_indices = @transform_5, window_bounds = array<i64: 1, 128>}, {pipeline_mode = #tpu.pipeline_mode<synchronous>, transform_indices = @transform_6, window_bounds = array<i64: 256, 128>}, {pipeline_mode = #tpu.pipeline_mode<synchronous>, transform_indices = @transform_7, window_bounds = array<i64: 1, 128>}, {transform_indices = @transform_8, window_bounds = array<i64: 8, 128>}]} {
    %c0 = arith.constant 0 : index
    %c0_0 = arith.constant 0 : index
    %0 = vector.load %arg1[%c0, %c0_0] : memref<8x32xf32, #tpu.memory_space<vmem>>, vector<8x32xf32>
    %1 = arith.truncf %0 : vector<8x32xf32> to vector<8x32xbf16>
    %c0_1 = arith.constant 0 : index
    %c0_2 = arith.constant 0 : index
    %2 = vector.load %arg3[%c0_1, %c0_2] : memref<32x128xbf16, #tpu.memory_space<vmem>>, vector<32x128xbf16>
    %cst = arith.constant dense<0.000000e+00> : vector<8x128xf32>
    %3 = tpu.matmul %1, %2, %cst {dimension_numbers = #tpu.dot_dimension_numbers<[1], [0], [0], [1], [0, 0, 1, 1], [], []>} : vector<8x32xbf16>, vector<32x128xbf16>, vector<8x128xf32> -> vector<8x128xf32>
    %c0_3 = arith.constant 0 : index
    %c0_4 = arith.constant 0 : index
    %4 = vector.load %arg4[%c0_3, %c0_4] : memref<1x128xf32, #tpu.memory_space<vmem>>, vector<1x128xf32>
    %5 = vector.broadcast %4 : vector<1x128xf32> to vector<8x128xf32>
    %6 = arith.addf %3, %5 : vector<8x128xf32>
    %7 = math.tanh %6 : vector<8x128xf32>
    %c0_5 = arith.constant 0 : index
    %c0_6 = arith.constant 0 : index
    %8 = vector.load %arg2[%c0_5, %c0_6] : memref<8x16xf32, #tpu.memory_space<vmem>>, vector<8x16xf32>
    %9 = arith.truncf %8 : vector<8x16xf32> to vector<8x16xbf16>
    %c0_7 = arith.constant 0 : index
    %c0_8 = arith.constant 0 : index
    %10 = vector.load %arg5[%c0_7, %c0_8] : memref<16x128xbf16, #tpu.memory_space<vmem>>, vector<16x128xbf16>
    %cst_9 = arith.constant dense<0.000000e+00> : vector<8x128xf32>
    %11 = tpu.matmul %9, %10, %cst_9 {dimension_numbers = #tpu.dot_dimension_numbers<[1], [0], [0], [1], [0, 0, 1, 1], [], []>} : vector<8x16xbf16>, vector<16x128xbf16>, vector<8x128xf32> -> vector<8x128xf32>
    %c0_10 = arith.constant 0 : index
    %c0_11 = arith.constant 0 : index
    %12 = vector.load %arg6[%c0_10, %c0_11] : memref<1x128xf32, #tpu.memory_space<vmem>>, vector<1x128xf32>
    %13 = vector.broadcast %12 : vector<1x128xf32> to vector<8x128xf32>
    %14 = arith.addf %11, %13 : vector<8x128xf32>
    %15 = math.tanh %14 : vector<8x128xf32>
    %16 = arith.truncf %7 : vector<8x128xf32> to vector<8x128xbf16>
    %17 = arith.truncf %15 : vector<8x128xf32> to vector<8x128xbf16>
    %18 = tpu.concatenate %16, %17 in 1 : vector<8x128xbf16>, vector<8x128xbf16> -> vector<8x256xbf16>
    %c0_12 = arith.constant 0 : index
    %c0_13 = arith.constant 0 : index
    %19 = vector.load %arg7[%c0_12, %c0_13] : memref<256x128xbf16, #tpu.memory_space<vmem>>, vector<256x128xbf16>
    %cst_14 = arith.constant dense<0.000000e+00> : vector<8x128xf32>
    %20 = tpu.matmul %18, %19, %cst_14 {dimension_numbers = #tpu.dot_dimension_numbers<[1], [0], [0], [1], [0, 0, 1, 1], [], []>} : vector<8x256xbf16>, vector<256x128xbf16>, vector<8x128xf32> -> vector<8x128xf32>
    %c0_15 = arith.constant 0 : index
    %c0_16 = arith.constant 0 : index
    %21 = vector.load %arg8[%c0_15, %c0_16] : memref<1x128xf32, #tpu.memory_space<vmem>>, vector<1x128xf32>
    %22 = vector.broadcast %21 : vector<1x128xf32> to vector<8x128xf32>
    %23 = arith.addf %20, %22 : vector<8x128xf32>
    %c0_17 = arith.constant 0 : index
    %c0_18 = arith.constant 0 : index
    %24 = vector.load %arg9[%c0_17, %c0_18] : memref<8x128xf32, #tpu.memory_space<vmem>>, vector<8x128xf32>
    tpu.vector_store %arg9[%c0_17, %c0_18], %23 {strides = array<i32>} : memref<8x128xf32, #tpu.memory_space<vmem>>, vector<8x128xf32>,
    return
  }
  func.func @transform_0(%arg0: i32) -> (i32, i32) {
    %c0_i32 = arith.constant 0 : i32
    %c0_i32_0 = arith.constant 0 : i32
    return %arg0, %c0_i32 : i32, i32
  }
  func.func @transform_1(%arg0: i32) -> (i32, i32) {
    %c0_i32 = arith.constant 0 : i32
    %c0_i32_0 = arith.constant 0 : i32
    return %arg0, %c0_i32 : i32, i32
  }
  func.func @transform_2(%arg0: i32) -> (i32, i32) {
    %c0_i32 = arith.constant 0 : i32
    %c0_i32_0 = arith.constant 0 : i32
    %c0_i32_1 = arith.constant 0 : i32
    return %c0_i32, %c0_i32_0 : i32, i32
  }
  func.func @transform_3(%arg0: i32) -> (i32, i32) {
    %c0_i32 = arith.constant 0 : i32
    %c0_i32_0 = arith.constant 0 : i32
    %c0_i32_1 = arith.constant 0 : i32
    return %c0_i32, %c0_i32_0 : i32, i32
  }
  func.func @transform_4(%arg0: i32) -> (i32, i32) {
    %c0_i32 = arith.constant 0 : i32
    %c0_i32_0 = arith.constant 0 : i32
    %c0_i32_1 = arith.constant 0 : i32
    return %c0_i32, %c0_i32_0 : i32, i32
  }
  func.func @transform_5(%arg0: i32) -> (i32, i32) {
    %c0_i32 = arith.constant 0 : i32
    %c0_i32_0 = arith.constant 0 : i32
    %c0_i32_1 = arith.constant 0 : i32
    return %c0_i32, %c0_i32_0 : i32, i32
  }
  func.func @transform_6(%arg0: i32) -> (i32, i32) {
    %c0_i32 = arith.constant 0 : i32
    %c0_i32_0 = arith.constant 0 : i32
    %c0_i32_1 = arith.constant 0 : i32
    return %c0_i32, %c0_i32_0 : i32, i32
  }
  func.func @transform_7(%arg0: i32) -> (i32, i32) {
    %c0_i32 = arith.constant 0 : i32
    %c0_i32_0 = arith.constant 0 : i32
    %c0_i32_1 = arith.constant 0 : i32
    return %c0_i32, %c0_i32_0 : i32, i32
  }
  func.func @transform_8(%arg0: i32) -> (i32, i32) {
    %c0_i32 = arith.constant 0 : i32
    %c0_i32_0 = arith.constant 0 : i32
    return %arg0, %c0_i32 : i32, i32
  }
}

</mosaic_0001>

<llo_original>
// kernel: tpu_custom_call.1
$region0: #{tpu_custom_call.1}
  #allocation0 [shape = 'u32[]', space=smem, size = 0x4, offset = 0x4, fixed_abs, tag = 'smem constant byte address 0x4 - core index']
  #allocation1 [shape = 'u32[144,128]{1,0:T(1,128)}', space=vmem, size = 0x12000, scoped, tag = 'internal scratch']
  %s0 = inlined_call_operand.hbm [shape: f32[16,32], index: 0, kind: input, shape index: {}]
  %s1 = inlined_call_operand.hbm [shape: f32[16,16], index: 1, kind: input, shape index: {}]
  %s2 = inlined_call_operand.hbm [shape: bf16[32,128], index: 2, kind: input, shape index: {}]
  %s3 = inlined_call_operand.vmem [shape: f32[1,128], index: 3, kind: input, shape index: {}]
  %s4 = inlined_call_operand.hbm [shape: bf16[16,128], index: 4, kind: input, shape index: {}]
  %s5 = inlined_call_operand.vmem [shape: f32[1,128], index: 5, kind: input, shape index: {}]
  %s6 = inlined_call_operand.hbm [shape: bf16[256,128], index: 6, kind: input, shape index: {}]
  %s7 = inlined_call_operand.vmem [shape: f32[1,128], index: 7, kind: input, shape index: {}]
  %s8 = inlined_call_operand.hbm [shape: f32[16,128], index: 8, kind: output, shape index: {}]
  %s9 = sld [smem:[#allocation0]]
  $region85: #{tpu_custom_call.1} parent=0
    _
  %s11 = ssub.s32 1, %s9
  %s12 = scalar_select 0, %s11, %s9
  $region1: #{tpu_custom_call.1} parent=0
    #allocation2 [shape = 'u8[8192]{0}', space=vmem, size = 0x2000, scoped, tag = 'input window, operand 0']
    #allocation3 [shape = 's32[2]{0}', space=sflag, size = 0x8, scoped, tag = 'scoped memory for tpu_custom_call.1']
    #allocation4 [shape = 's32[2]{0}', space=sflag, size = 0x8, scoped, tag = 'scoped memory for tpu_custom_call.1']
    #allocation5 [shape = 'u8[8192]{0}', space=vmem, size = 0x2000, scoped, tag = 'input window, operand 1']
    #allocation6 [shape = 's32[2]{0}', space=sflag, size = 0x8, scoped, tag = 'scoped memory for tpu_custom_call.1']
    #allocation7 [shape = 'u8[8192]{0}', space=vmem, size = 0x2000, scoped, tag = 'input window, operand 2, single buffered']
    #allocation8 [shape = 'u8[4096]{0}', space=vmem, size = 0x1000, scoped, tag = 'input window, operand 4, single buffered']
    #allocation9 [shape = 's32[1]{0}', space=sflag, size = 0x4, scoped, tag = 'scoped memory for tpu_custom_call.1']
    #allocation10 [shape = 'u8[65536]{0}', space=vmem, size = 0x10000, scoped, tag = 'input window, operand 6, single buffered']
    #allocation11 [shape = 'u8[8192]{0}', space=vmem, size = 0x2000, scoped, tag = 'output window, operand 0']
    %13 = vsyncpa [#allocation3], 0
    %s14 = scalar_lea.sflag [#allocation3], 1
    %15 = vsyncpa %s14, 0
    %16 = vsyncpa [#allocation6], 0
    %s17 = scalar_lea.sflag [#allocation6], 1
    %18 = vsyncpa %s17, 0
    %19 = vsyncpa [#allocation9], 0
    %20 = vsyncpa [#allocation4], 0
    %s21 = scalar_lea.sflag [#allocation4], 1
    %22 = vsyncpa %s21, 0
    loop: start=0, step=1, limit=4
    $region2: #{tpu_custom_call.1} parent=1 // loop_pre_header
      _
    $region3: #{tpu_custom_call.1} parent=1 // loop_header
      %s24 = sphi 0, %s28
      %p25 = scmp.ge.s32.totalorder %s24, 4
      %s34 = sphi 0, %s36
      %s37 = sphi 0, %s34
      %s38 = sphi 0, %s37
      %s54 = sphi 0, %s38
      %s60 = sphi 0, %s62
      %s63 = sphi 0, %s60
      %s64 = sphi 0, %s63
      %s80 = sphi 0, %s64
      %s84 = sphi 0, %s84
      %s86 = sphi 0, %s84
      %s87 = sphi 0, %s86
      %s101 = sphi 0, %s87
      %s105 = sphi 0, %s105
      %s107 = sphi 0, %s105
      %s108 = sphi 0, %s107
      %s122 = sphi 0, %s108
      %s126 = sphi 0, %s126
      %s128 = sphi 0, %s126
      %s129 = sphi 0, %s128
      %s143 = sphi 0, %s129
      %s147 = sphi 0, %s147
      %s149 = sphi 0, %s147
      %s150 = sphi 0, %s149
      %s164 = sphi 0, %s150
      %s168 = sphi 0, %s168
      %s170 = sphi 0, %s168
      %s171 = sphi 0, %s170
      %s185 = sphi 0, %s171
      %s189 = sphi 0, %s189
      %s191 = sphi 0, %s189
      %s192 = sphi 0, %s191
      %s206 = sphi 0, %s192
      %s212 = sphi 0, %s214
      %s215 = sphi 0, %s212
      %s216 = sphi 0, %s215
      %s232 = sphi 0, %s216
    $region4: #{tpu_custom_call.1} parent=1 // loop_header_branch
      %27 = sbr.rel (%p25) target = $region8
    $region5: #{tpu_custom_call.1} parent=1 // loop_body
      %s29 = ssub.s32 %s24, 1
      %s30 = ssub.s32 %s24, 2
      %s31 = sadd.s32 %s24, 1
      %s32 = ssub.s32 %s24, %s31
      %p33 = scmp.eq.s32.totalorder %s32, 0
      %s35 = sadd.s32 %s34, 1
      %s36 = scalar_select %p33, %s34, %s35
      %p39 = pneg %p33
      %p40 = scmp.eq.s32.totalorder %s24, 1
      %p41 = por %p39, %p40
      %p42 = scmp.ne.s32.totalorder %s34, %s37
      %p43 = scmp.eq.s32.totalorder %s24, 0
      %p44 = por %p42, %p43
      %p45 = scmp.ne.s32.totalorder %s34, %s37
      %p46 = scmp.eq.s32.totalorder %s29, 1
      %p47 = por %p45, %p46
      %p48 = scmp.ne.s32.totalorder %s37, %s38
      %p49 = scmp.eq.s32.totalorder %s29, 0
      %p50 = por %p48, %p49
      %p51 = scmp.ne.s32.totalorder %s37, %s38
      %p52 = scmp.eq.s32.totalorder %s30, 1
      %p53 = por %p51, %p52
      %p55 = scmp.ne.s32.totalorder %s38, %s54
      %p56 = scmp.eq.s32.totalorder %s30, 0
      %p57 = por %p55, %p56
      %s58 = ssub.s32 %s24, %s31
      %p59 = scmp.eq.s32.totalorder %s58, 0
      %s61 = sadd.s32 %s60, 1
      %s62 = scalar_select %p59, %s60, %s61
      %p65 = pneg %p59
      %p66 = scmp.eq.s32.totalorder %s24, 1
      %p67 = por %p65, %p66
      %p68 = scmp.ne.s32.totalorder %s60, %s63
      %p69 = scmp.eq.s32.totalorder %s24, 0
      %p70 = por %p68, %p69
      %p71 = scmp.ne.s32.totalorder %s60, %s63
      %p72 = scmp.eq.s32.totalorder %s29, 1
      %p73 = por %p71, %p72
      %p74 = scmp.ne.s32.totalorder %s63, %s64
      %p75 = scmp.eq.s32.totalorder %s29, 0
      %p76 = por %p74, %p75
      %p77 = scmp.ne.s32.totalorder %s63, %s64
      %p78 = scmp.eq.s32.totalorder %s30, 1
      %p79 = por %p77, %p78
      %p81 = scmp.ne.s32.totalorder %s64, %s80
      %p82 = scmp.eq.s32.totalorder %s30, 0
      %p83 = por %p81, %p82
      %s85 = sadd.s32 %s84, 1
      %p88 = scmp.eq.s32.totalorder %s24, 1
      %p89 = scmp.ne.s32.totalorder %s84, %s86
      %p90 = scmp.eq.s32.totalorder %s24, 0
      %p91 = por %p89, %p90
      %p92 = scmp.ne.s32.totalorder %s84, %s86
      %p93 = scmp.eq.s32.totalorder %s29, 1
      %p94 = por %p92, %p93
      %p95 = scmp.ne.s32.totalorder %s86, %s87
      %p96 = scmp.eq.s32.totalorder %s29, 0
      %p97 = por %p95, %p96
      %p98 = scmp.ne.s32.totalorder %s86, %s87
      %p99 = scmp.eq.s32.totalorder %s30, 1
      %p100 = por %p98, %p99
      %p102 = scmp.ne.s32.totalorder %s87, %s101
      %p103 = scmp.eq.s32.totalorder %s30, 0
      %p104 = por %p102, %p103
      %s106 = sadd.s32 %s105, 1
      %p109 = scmp.eq.s32.totalorder %s24, 1
      %p110 = scmp.ne.s32.totalorder %s105, %s107
      %p111 = scmp.eq.s32.totalorder %s24, 0
      %p112 = por %p110, %p111
      %p113 = scmp.ne.s32.totalorder %s105, %s107
      %p114 = scmp.eq.s32.totalorder %s29, 1
      %p115 = por %p113, %p114
      %p116 = scmp.ne.s32.totalorder %s107, %s108
      %p117 = scmp.eq.s32.totalorder %s29, 0
      %p118 = por %p116, %p117
      %p119 = scmp.ne.s32.totalorder %s107, %s108
      %p120 = scmp.eq.s32.totalorder %s30, 1
      %p121 = por %p119, %p120
      %p123 = scmp.ne.s32.totalorder %s108, %s122
      %p124 = scmp.eq.s32.totalorder %s30, 0
      %p125 = por %p123, %p124
      %s127 = sadd.s32 %s126, 1
      %p130 = scmp.eq.s32.totalorder %s24, 1
      %p131 = scmp.ne.s32.totalorder %s126, %s128
      %p132 = scmp.eq.s32.totalorder %s24, 0
      %p133 = por %p131, %p132
      %p134 = scmp.ne.s32.totalorder %s126, %s128
      %p135 = scmp.eq.s32.totalorder %s29, 1
      %p136 = por %p134, %p135
      %p137 = scmp.ne.s32.totalorder %s128, %s129
      %p138 = scmp.eq.s32.totalorder %s29, 0
      %p139 = por %p137, %p138
      %p140 = scmp.ne.s32.totalorder %s128, %s129
      %p141 = scmp.eq.s32.totalorder %s30, 1
      %p142 = por %p140, %p141
      %p144 = scmp.ne.s32.totalorder %s129, %s143
      %p145 = scmp.eq.s32.totalorder %s30, 0
      %p146 = por %p144, %p145
      %s148 = sadd.s32 %s147, 1
      %p151 = scmp.eq.s32.totalorder %s24, 1
      %p152 = scmp.ne.s32.totalorder %s147, %s149
      %p153 = scmp.eq.s32.totalorder %s24, 0
      %p154 = por %p152, %p153
      %p155 = scmp.ne.s32.totalorder %s147, %s149
      %p156 = scmp.eq.s32.totalorder %s29, 1
      %p157 = por %p155, %p156
      %p158 = scmp.ne.s32.totalorder %s149, %s150
      %p159 = scmp.eq.s32.totalorder %s29, 0
      %p160 = por %p158, %p159
      %p161 = scmp.ne.s32.totalorder %s149, %s150
      %p162 = scmp.eq.s32.totalorder %s30, 1
      %p163 = por %p161, %p162
      %p165 = scmp.ne.s32.totalorder %s150, %s164
      %p166 = scmp.eq.s32.totalorder %s30, 0
      %p167 = por %p165, %p166
      %s169 = sadd.s32 %s168, 1
      %p172 = scmp.eq.s32.totalorder %s24, 1
      %p173 = scmp.ne.s32.totalorder %s168, %s170
      %p174 = scmp.eq.s32.totalorder %s24, 0
      %p175 = por %p173, %p174
      %p176 = scmp.ne.s32.totalorder %s168, %s170
      %p177 = scmp.eq.s32.totalorder %s29, 1
      %p178 = por %p176, %p177
      %p179 = scmp.ne.s32.totalorder %s170, %s171
      %p180 = scmp.eq.s32.totalorder %s29, 0
      %p181 = por %p179, %p180
      %p182 = scmp.ne.s32.totalorder %s170, %s171
      %p183 = scmp.eq.s32.totalorder %s30, 1
      %p184 = por %p182, %p183
      %p186 = scmp.ne.s32.totalorder %s171, %s185
      %p187 = scmp.eq.s32.totalorder %s30, 0
      %p188 = por %p186, %p187
      %s190 = sadd.s32 %s189, 1
      %p193 = scmp.eq.s32.totalorder %s24, 1
      %p194 = scmp.ne.s32.totalorder %s189, %s191
      %p195 = scmp.eq.s32.totalorder %s24, 0
      %p196 = por %p194, %p195
      %p197 = scmp.ne.s32.totalorder %s189, %s191
      %p198 = scmp.eq.s32.totalorder %s29, 1
      %p199 = por %p197, %p198
      %p200 = scmp.ne.s32.totalorder %s191, %s192
      %p201 = scmp.eq.s32.totalorder %s29, 0
      %p202 = por %p200, %p201
      %p203 = scmp.ne.s32.totalorder %s191, %s192
      %p204 = scmp.eq.s32.totalorder %s30, 1
      %p205 = por %p203, %p204
      %p207 = scmp.ne.s32.totalorder %s192, %s206
      %p208 = scmp.eq.s32.totalorder %s30, 0
      %p209 = por %p207, %p208
      %s210 = ssub.s32 %s24, %s31
      %p211 = scmp.eq.s32.totalorder %s210, 0
      %s213 = sadd.s32 %s212, 1
      %s214 = scalar_select %p211, %s212, %s213
      %p217 = pneg %p211
      %p218 = scmp.eq.s32.totalorder %s24, 1
      %p219 = por %p217, %p218
      %p220 = scmp.ne.s32.totalorder %s212, %s215
      %p221 = scmp.eq.s32.totalorder %s24, 0
      %p222 = por %p220, %p221
      %p223 = scmp.ne.s32.totalorder %s212, %s215
      %p224 = scmp.eq.s32.totalorder %s29, 1
      %p225 = por %p223, %p224
      %p226 = scmp.ne.s32.totalorder %s215, %s216
      %p227 = scmp.eq.s32.totalorder %s29, 0
      %p228 = por %p226, %p227
      %p229 = scmp.ne.s32.totalorder %s215, %s216
      %p230 = scmp.eq.s32.totalorder %s30, 1
      %p231 = por %p229, %p230
      %p233 = scmp.ne.s32.totalorder %s216, %s232
      %p234 = scmp.eq.s32.totalorder %s30, 0
      %p235 = por %p233, %p234
      %p236 = scmp.le.s32.totalorder 1, %s24
      %p237 = scmp.lt.s32.totalorder %s24, 3
      %p238 = pnand %p236, %p237
      %p239 = pneg %p238
      // Predicated region
      $region9: #{tpu_custom_call.1} parent=5 // pred_check
        _
      $region10: #{tpu_custom_call.1} parent=5 // pred_check_branch
        %241 = sbr.rel (%p238) target = $region12
      $region11: #{tpu_custom_call.1} parent=5 // pred_region
        %s242 = ssub.s32 %s24, 1
        // Predicated region
        $region13: #{tpu_custom_call.1} parent=11 // pred_check
          %p243 = pneg %p97
        $region14: #{tpu_custom_call.1} parent=11 // pred_check_branch
          %245 = sbr.rel (%p243) target = $region16
        $region15: #{tpu_custom_call.1} parent=11 // pred_region
          %s247 = ssub.s32 256, 256
          %248 = vsyncadd [#allocation6], %s247
          %s249 = sshll.u32 [#allocation7], 4
          %s250 = int_to_ptr.vmem [resolvable:$true] %s249
          %255 = dma.hbm_to_vmem [thread:$0]  %s2, 256, %s250, [#allocation6], 64, 64, 4
        $region16: #{tpu_custom_call.1} parent=11 // pred_fallthru
          _
        // Predicated region
        $region17: #{tpu_custom_call.1} parent=11 // pred_check
          %p256 = pneg %p118
        $region18: #{tpu_custom_call.1} parent=11 // pred_check_branch
          %258 = sbr.rel (%p256) target = $region20
        $region19: #{tpu_custom_call.1} parent=11 // pred_region
          _
        $region20: #{tpu_custom_call.1} parent=11 // pred_fallthru
          _
        // Predicated region
        $region21: #{tpu_custom_call.1} parent=11 // pred_check
          %p259 = pneg %p139
        $region22: #{tpu_custom_call.1} parent=11 // pred_check_branch
          %261 = sbr.rel (%p259) target = $region24
        $region23: #{tpu_custom_call.1} parent=11 // pred_region
          %s263 = ssub.s32 128, 128
          %264 = vsyncadd [#allocation9], %s263
          %s265 = sshll.u32 [#allocation8], 4
          %s266 = int_to_ptr.vmem [resolvable:$true] %s265
          %271 = dma.hbm_to_vmem [thread:$0]  %s4, 128, %s266, [#allocation9], 64, 64, 4
        $region24: #{tpu_custom_call.1} parent=11 // pred_fallthru
          _
        // Predicated region
        $region25: #{tpu_custom_call.1} parent=11 // pred_check
          %p272 = pneg %p160
        $region26: #{tpu_custom_call.1} parent=11 // pred_check_branch
          %274 = sbr.rel (%p272) target = $region28
        $region27: #{tpu_custom_call.1} parent=11 // pred_region
          _
        $region28: #{tpu_custom_call.1} parent=11 // pred_fallthru
          _
        // Predicated region
        $region29: #{tpu_custom_call.1} parent=11 // pred_check
          %p275 = pneg %p181
        $region30: #{tpu_custom_call.1} parent=11 // pred_check_branch
          %277 = sbr.rel (%p275) target = $region32
        $region31: #{tpu_custom_call.1} parent=11 // pred_region
          %s279 = ssub.s32 2048, 2048
          %280 = vsyncadd [#allocation9], %s279
          %s281 = sshll.u32 [#allocation10], 4
          %s282 = int_to_ptr.vmem [resolvable:$true] %s281
          %287 = dma.hbm_to_vmem [thread:$0]  %s6, 2048, %s282, [#allocation9], 64, 64, 4
        $region32: #{tpu_custom_call.1} parent=11 // pred_fallthru
          _
        // Predicated region
        $region33: #{tpu_custom_call.1} parent=11 // pred_check
          %p288 = pneg %p202
        $region34: #{tpu_custom_call.1} parent=11 // pred_check_branch
          %290 = sbr.rel (%p288) target = $region36
        $region35: #{tpu_custom_call.1} parent=11 // pred_region
          _
        $region36: #{tpu_custom_call.1} parent=11 // pred_fallthru
          _
      $region12: #{tpu_custom_call.1} parent=5 // pred_fallthru
        _
      %p291 = scmp.lt.s32.totalorder %s24, 2
      // Predicated region
      $region37: #{tpu_custom_call.1} parent=5 // pred_check
        %p292 = pneg %p291
      $region38: #{tpu_custom_call.1} parent=5 // pred_check_branch
        %294 = sbr.rel (%p292) target = $region40
      $region39: #{tpu_custom_call.1} parent=5 // pred_region
        // Predicated region
        $region41: #{tpu_custom_call.1} parent=39 // pred_check
          %p295 = pneg %p44
        $region42: #{tpu_custom_call.1} parent=39 // pred_check_branch
          %297 = sbr.rel (%p295) target = $region44
        $region43: #{tpu_custom_call.1} parent=39 // pred_region
          %s298 = sand.u32 %s34, 1
          %s299 = scalar_lea.sflag [#allocation3], %s298
          %s300 = sand.u32 %s34, 1
          %s301 = smul.addr %s300, 8
          %s302 = scalar_lea.vmem [#allocation2], %s301
          %s304 = ssub.s32 128, 128
          %305 = vsyncadd %s299, %s304
          %s306 = smul.addr %s24, 128
          %s307 = scalar_lea.hbm %s0, %s306
          %s309 = sshll.u32 %s302, 4
          %s310 = int_to_ptr.vmem [resolvable:$true] %s309
          %312 = dma.hbm_to_vmem [thread:$0]  %s307, 128, %s310, %s299
        $region44: #{tpu_custom_call.1} parent=39 // pred_fallthru
          _
        // Predicated region
        $region45: #{tpu_custom_call.1} parent=39 // pred_check
          %p313 = pneg %p70
        $region46: #{tpu_custom_call.1} parent=39 // pred_check_branch
          %315 = sbr.rel (%p313) target = $region48
        $region47: #{tpu_custom_call.1} parent=39 // pred_region
          %s316 = sand.u32 %s24, 1
          %s317 = scalar_lea.sflag [#allocation6], %s316
          %s318 = sand.u32 %s60, 1
          %s319 = smul.addr %s318, 8
          %s320 = scalar_lea.vmem [#allocation5], %s319
          %s322 = ssub.s32 128, 128
          %323 = vsyncadd %s317, %s322
          %s324 = smul.addr %s24, 128
          %s325 = scalar_lea.hbm %s1, %s324
          %s327 = sshll.u32 %s320, 4
          %s328 = int_to_ptr.vmem [resolvable:$true] %s327
          %330 = dma.hbm_to_vmem [thread:$0]  %s325, 128, %s328, %s317
        $region48: #{tpu_custom_call.1} parent=39 // pred_fallthru
          _
      $region40: #{tpu_custom_call.1} parent=5 // pred_fallthru
        _
      %p331 = scmp.le.s32.totalorder 1, %s24
      %p332 = scmp.lt.s32.totalorder %s24, 3
      %p333 = pnand %p331, %p332
      %p334 = pneg %p333
      // Predicated region
      $region49: #{tpu_custom_call.1} parent=5 // pred_check
        _
      $region50: #{tpu_custom_call.1} parent=5 // pred_check_branch
        %336 = sbr.rel (%p333) target = $region52
      $region51: #{tpu_custom_call.1} parent=5 // pred_region
        %s337 = ssub.s32 %s24, 1
        %s338 = sand.u32 %s37, 1
        %s339 = scalar_lea.sflag [#allocation3], %s338
        %s340 = sand.u32 %s37, 1
        %s341 = smul.addr %s340, 8
        %s342 = scalar_lea.vmem [#allocation2], %s341
        // Predicated region
        $region53: #{tpu_custom_call.1} parent=51 // pred_check
          %p343 = pneg %p50
        $region54: #{tpu_custom_call.1} parent=51 // pred_check_branch
          %345 = sbr.rel (%p343) target = $region56
        $region55: #{tpu_custom_call.1} parent=51 // pred_region
          %346 = dma.done %s339, 128
        $region56: #{tpu_custom_call.1} parent=51 // pred_fallthru
          _
        %s347 = sand.u32 %s29, 1
        %s348 = scalar_lea.sflag [#allocation6], %s347
        %s349 = sand.u32 %s63, 1
        %s350 = smul.addr %s349, 8
        %s351 = scalar_lea.vmem [#allocation5], %s350
        // Predicated region
        $region57: #{tpu_custom_call.1} parent=51 // pred_check
          %p352 = pneg %p76
        $region58: #{tpu_custom_call.1} parent=51 // pred_check_branch
          %354 = sbr.rel (%p352) target = $region60
        $region59: #{tpu_custom_call.1} parent=51 // pred_region
          %355 = dma.done %s348, 128
        $region60: #{tpu_custom_call.1} parent=51 // pred_fallthru
          _
        // Predicated region
        $region61: #{tpu_custom_call.1} parent=51 // pred_check
          %p356 = pneg %p97
        $region62: #{tpu_custom_call.1} parent=51 // pred_check_branch
          %358 = sbr.rel (%p356) target = $region64
        $region63: #{tpu_custom_call.1} parent=51 // pred_region
          %359 = dma.done [#allocation6], 256
        $region64: #{tpu_custom_call.1} parent=51 // pred_fallthru
          _
        // Predicated region
        $region65: #{tpu_custom_call.1} parent=51 // pred_check
          %p360 = pneg %p139
        $region66: #{tpu_custom_call.1} parent=51 // pred_check_branch
          %362 = sbr.rel (%p360) target = $region68
        $region67: #{tpu_custom_call.1} parent=51 // pred_region
          %363 = dma.done [#allocation9], 128
        $region68: #{tpu_custom_call.1} parent=51 // pred_fallthru
          _
        // Predicated region
        $region69: #{tpu_custom_call.1} parent=51 // pred_check
          %p364 = pneg %p181
        $region70: #{tpu_custom_call.1} parent=51 // pred_check_branch
          %366 = sbr.rel (%p364) target = $region72
        $region71: #{tpu_custom_call.1} parent=51 // pred_region
          %367 = dma.done [#allocation9], 2048
        $region72: #{tpu_custom_call.1} parent=51 // pred_fallthru
          _
        %s368 = sand.u32 %s37, 1
        %s369 = scalar_lea.sflag [#allocation3], %s368
        %s370 = sand.u32 %s37, 1
        %s371 = smul.addr %s370, 8
        %s372 = scalar_lea.vmem [#allocation2], %s371
        %p373 = pneg %p50
        %p374 = pneg %p47
        %s375 = sand.u32 %s29, 1
        %s376 = scalar_lea.sflag [#allocation6], %s375
        %s377 = sand.u32 %s63, 1
        %s378 = smul.addr %s377, 8
        %s379 = scalar_lea.vmem [#allocation5], %s378
        %p380 = pneg %p76
        %p381 = pneg %p73
        %p382 = pneg %p97
        %p383 = pneg %p94
        %p384 = pneg %p118
        %p385 = pneg %p115
        %p386 = pneg %p139
        %p387 = pneg %p136
        %p388 = pneg %p160
        %p389 = pneg %p157
        %p390 = pneg %p181
        %p391 = pneg %p178
        %p392 = pneg %p202
        %p393 = pneg %p199
        %p394 = pneg %p228
        %p395 = pneg %p225
        %s396 = sand.u32 %s215, 1
        %s397 = scalar_lea.sflag [#allocation4], %s396
        %s398 = sand.u32 %s215, 1
        %s399 = smul.addr %s398, 8
        %s400 = scalar_lea.vmem [#allocation11], %s399
        %v402 = vld [vmem:[%s342] sm:$0xff]
        %v403 = vpack.c.bf16 %v402, %v402
        %v404 = vld [vmem:[#allocation7] sm:$0xf]
        %v405 = vld [vmem:[#allocation7 + $0x4] sm:$0xf]
        %v406 = vld [vmem:[#allocation7 + $0x8] sm:$0xf]
        %v407 = vld [vmem:[#allocation7 + $0xc] sm:$0xf]
        %v408 = vld [vmem:[%s3] sm:$0x1]
        %v410 = vlaneseq
        %v411 = vshrl.u32 %v410, 7
        %v412 = vsub.s32 0, %v411
        %v413 = vrot.slane %v408, %v412
        %v419 = vunpack.c.l.b16 %v404
        %v420 = vunpack.c.l.b16 %v405
        %v421 = vunpack.c.l.b16 %v406
        %v422 = vunpack.c.l.b16 %v407
        %v423 = vpack.c.b16 %v420, %v419
        %v424 = vpack.c.b16 %v422, %v421
        %vm427 = vcmask 261120
        %v429 = vsel %vm427, %v403, 0
        %431 = vmatprep.subr.bf16.mxu0 0
        %432 = vmatpush1.bf16.msra.mxu0 0
        %433 = vmatprep.subr.bf16.mxu0 0
        %434 = vmatpush1.bf16.msra.mxu0 0
        %435 = vmatprep.subr.bf16.mxu0 0
        %436 = vmatpush1.bf16.msra.mxu0 0
        %437 = vmatprep.subr.bf16.mxu0 0
        %438 = vmatpush1.bf16.msra.mxu0 0
        %439 = vmatprep.subr.bf16.mxu0 0
        %440 = vmatpush1.bf16.msra.mxu0 0
        %441 = vmatprep.subr.bf16.mxu0 0
        %442 = vmatpush1.bf16.msra.mxu0 0
        %443 = vmatprep.subr.bf16.mxu0 0
        %444 = vmatpush1.bf16.msra.mxu0 %v424
        %445 = vmatprep.subr.bf16.mxu0 0
        %446 = vmatpush1.bf16.msra.mxu0 %v423
        %447 = vmatprep.subr.bf16.mxu0 0
        %448 = vmatpush2.bf16.msra.mxu0 0
        %449 = vmatprep.subr.bf16.mxu0 0
        %450 = vmatpush2.bf16.msra.mxu0 0
        %451 = vmatprep.subr.bf16.mxu0 0
        %452 = vmatpush2.bf16.msra.mxu0 0
        %453 = vmatprep.subr.bf16.mxu0 0
        %454 = vmatpush2.bf16.msra.mxu0 0
        %455 = vmatprep.subr.bf16.mxu0 0
        %456 = vmatpush2.bf16.msra.mxu0 0
        %457 = vmatprep.subr.bf16.mxu0 0
        %458 = vmatpush2.bf16.msra.mxu0 0
        %459 = vmatprep.subr.bf16.mxu0 0
        %460 = vmatpush2.bf16.msra.mxu0 0
        %461 = vmatprep.subr.bf16.mxu0 0
        %462 = vmatpush2.bf16.msra.mxu0 0
        %463 = vmatprep.mubr.bf16.mxu0 0
        %464 = vmatmul.mubr.bf16.gmra.mxu0 %v429
        %v465 = vpop.f32.mrf.mxu0
        %v466 = vadd.f32 %v413, %v465
        %v467 = vpop.f32.mrf.mxu0
        %v468 = vpop.f32.mrf.mxu0
        %v469 = vpop.f32.mrf.mxu0
        %470 = vdwg.mxu0
        %v471 = vtanh.pop %v466
        %v472 = vld [vmem:[%s351] sm:$0xff]
        %v473 = vpack.c.bf16 %v472, %v472
        %v474 = vld [vmem:[#allocation8] sm:$0xf]
        %v475 = vld [vmem:[#allocation8 + $0x4] sm:$0xf]
        %v476 = vld [vmem:[%s5] sm:$0x1]
        %v478 = vlaneseq
        %v479 = vshrl.u32 %v478, 7
        %v480 = vsub.s32 0, %v479
        %v481 = vrot.slane %v476, %v480
        %v485 = vunpack.c.l.b16 %v474
        %v486 = vunpack.c.l.b16 %v475
        %v487 = vpack.c.b16 %v486, %v485
        %vm489 = vcmask 130048
        %v491 = vsel %vm489, %v473, 0
        %493 = vmatprep.subr.bf16.mxu0 0
        %494 = vmatpush1.bf16.msra.mxu0 0
        %495 = vmatprep.subr.bf16.mxu0 0
        %496 = vmatpush1.bf16.msra.mxu0 0
        %497 = vmatprep.subr.bf16.mxu0 0
        %498 = vmatpush1.bf16.msra.mxu0 0
        %499 = vmatprep.subr.bf16.mxu0 0
        %500 = vmatpush1.bf16.msra.mxu0 0
        %501 = vmatprep.subr.bf16.mxu0 0
        %502 = vmatpush1.bf16.msra.mxu0 0
        %503 = vmatprep.subr.bf16.mxu0 0
        %504 = vmatpush1.bf16.msra.mxu0 0
        %505 = vmatprep.subr.bf16.mxu0 0
        %506 = vmatpush1.bf16.msra.mxu0 0
        %507 = vmatprep.subr.bf16.mxu0 0
        %508 = vmatpush1.bf16.msra.mxu0 %v487
        %509 = vmatprep.subr.bf16.mxu0 0
        %510 = vmatpush2.bf16.msra.mxu0 0
        %511 = vmatprep.subr.bf16.mxu0 0
        %512 = vmatpush2.bf16.msra.mxu0 0
        %513 = vmatprep.subr.bf16.mxu0 0
        %514 = vmatpush2.bf16.msra.mxu0 0
        %515 = vmatprep.subr.bf16.mxu0 0
        %516 = vmatpush2.bf16.msra.mxu0 0
        %517 = vmatprep.subr.bf16.mxu0 0
        %518 = vmatpush2.bf16.msra.mxu0 0
        %519 = vmatprep.subr.bf16.mxu0 0
        %520 = vmatpush2.bf16.msra.mxu0 0
        %521 = vmatprep.subr.bf16.mxu0 0
        %522 = vmatpush2.bf16.msra.mxu0 0
        %523 = vmatprep.subr.bf16.mxu0 0
        %524 = vmatpush2.bf16.msra.mxu0 0
        %525 = vmatprep.mubr.bf16.mxu0 0
        %526 = vmatmul.mubr.bf16.gmra.mxu0 %v491
        %v527 = vpop.f32.mrf.mxu0
        %v528 = vadd.f32 %v481, %v527
        %v529 = vpop.f32.mrf.mxu0
        %v530 = vpop.f32.mrf.mxu0
        %v531 = vpop.f32.mrf.mxu0
        %532 = vdwg.mxu0
        %v533 = vtanh.pop %v528
        %v534 = vpack.c.bf16 %v471, %v471
        %v535 = vpack.c.bf16 %v533, %v533
        %v536 = vld [vmem:[#allocation10] sm:$0xf]
        %v537 = vld [vmem:[#allocation10 + $0x4] sm:$0xf]
        %v538 = vld [vmem:[#allocation10 + $0x8] sm:$0xf]
        %v539 = vld [vmem:[#allocation10 + $0xc] sm:$0xf]
        %v540 = vld [vmem:[#allocation10 + $0x10] sm:$0xf]
        %v541 = vld [vmem:[#allocation10 + $0x14] sm:$0xf]
        %v542 = vld [vmem:[#allocation10 + $0x18] sm:$0xf]
        %v543 = vld [vmem:[#allocation10 + $0x1c] sm:$0xf]
        %v544 = vld [vmem:[#allocation10 + $0x20] sm:$0xf]
        %v545 = vld [vmem:[#allocation10 + $0x24] sm:$0xf]
        %v546 = vld [vmem:[#allocation10 + $0x28] sm:$0xf]
        %v547 = vld [vmem:[#allocation10 + $0x2c] sm:$0xf]
        %v548 = vld [vmem:[#allocation10 + $0x30] sm:$0xf]
        %v549 = vld [vmem:[#allocation10 + $0x34] sm:$0xf]
        %v550 = vld [vmem:[#allocation10 + $0x38] sm:$0xf]
        %v551 = vld [vmem:[#allocation10 + $0x3c] sm:$0xf]
        %v552 = vld [vmem:[#allocation10 + $0x40] sm:$0xf]
        %v553 = vld [vmem:[#allocation10 + $0x44] sm:$0xf]
        %v554 = vld [vmem:[#allocation10 + $0x48] sm:$0xf]
        %v555 = vld [vmem:[#allocation10 + $0x4c] sm:$0xf]
        %v556 = vld [vmem:[#allocation10 + $0x50] sm:$0xf]
        %v557 = vld [vmem:[#allocation10 + $0x54] sm:$0xf]
        %v558 = vld [vmem:[#allocation10 + $0x58] sm:$0xf]
        %v559 = vld [vmem:[#allocation10 + $0x5c] sm:$0xf]
        %v560 = vld [vmem:[#allocation10 + $0x60] sm:$0xf]
        %v561 = vld [vmem:[#allocation10 + $0x64] sm:$0xf]
        %v562 = vld [vmem:[#allocation10 + $0x68] sm:$0xf]
        %v563 = vld [vmem:[#allocation10 + $0x6c] sm:$0xf]
        %v564 = vld [vmem:[#allocation10 + $0x70] sm:$0xf]
        %v565 = vld [vmem:[#allocation10 + $0x74] sm:$0xf]
        %v566 = vld [vmem:[#allocation10 + $0x78] sm:$0xf]
        %v567 = vld [vmem:[#allocation10 + $0x7c] sm:$0xf]
        %v568 = vld [vmem:[%s7] sm:$0x1]
        %v570 = vlaneseq
        %v571 = vshrl.u32 %v570, 7
        %v572 = vsub.s32 0, %v571
        %v573 = vrot.slane %v568, %v572
        %v607 = vunpack.c.l.b16 %v536
        %v608 = vunpack.c.l.b16 %v537
        %v609 = vunpack.c.l.b16 %v538
        %v610 = vunpack.c.l.b16 %v539
        %v611 = vunpack.c.l.b16 %v540
        %v612 = vunpack.c.l.b16 %v541
        %v613 = vunpack.c.l.b16 %v542
        %v614 = vunpack.c.l.b16 %v543
        %v615 = vunpack.c.l.b16 %v544
        %v616 = vunpack.c.l.b16 %v545
        %v617 = vunpack.c.l.b16 %v546
        %v618 = vunpack.c.l.b16 %v547
        %v619 = vunpack.c.l.b16 %v548
        %v620 = vunpack.c.l.b16 %v549
        %v621 = vunpack.c.l.b16 %v550
        %v622 = vunpack.c.l.b16 %v551
        %v623 = vunpack.c.l.b16 %v552
        %v624 = vunpack.c.l.b16 %v553
        %v625 = vunpack.c.l.b16 %v554
        %v626 = vunpack.c.l.b16 %v555
        %v627 = vunpack.c.l.b16 %v556
        %v628 = vunpack.c.l.b16 %v557
        %v629 = vunpack.c.l.b16 %v558
        %v630 = vunpack.c.l.b16 %v559
        %v631 = vunpack.c.l.b16 %v560
        %v632 = vunpack.c.l.b16 %v561
        %v633 = vunpack.c.l.b16 %v562
        %v634 = vunpack.c.l.b16 %v563
        %v635 = vunpack.c.l.b16 %v564
        %v636 = vunpack.c.l.b16 %v565
        %v637 = vunpack.c.l.b16 %v566
        %v638 = vunpack.c.l.b16 %v567
        %v639 = vpack.c.b16 %v608, %v607
        %v640 = vpack.c.b16 %v610, %v609
        %v641 = vpack.c.b16 %v612, %v611
        %v642 = vpack.c.b16 %v614, %v613
        %v643 = vpack.c.b16 %v616, %v615
        %v644 = vpack.c.b16 %v618, %v617
        %v645 = vpack.c.b16 %v620, %v619
        %v646 = vpack.c.b16 %v622, %v621
        %v647 = vpack.c.b16 %v624, %v623
        %v648 = vpack.c.b16 %v626, %v625
        %v649 = vpack.c.b16 %v628, %v627
        %v650 = vpack.c.b16 %v630, %v629
        %v651 = vpack.c.b16 %v632, %v631
        %v652 = vpack.c.b16 %v634, %v633
        %v653 = vpack.c.b16 %v636, %v635
        %v654 = vpack.c.b16 %v638, %v637
        %671 = vmatprep.subr.bf16.mxu0 0
        %672 = vmatpush1.bf16.msra.mxu0 %v646
        %673 = vmatprep.subr.bf16.mxu0 0
        %674 = vmatpush1.bf16.msra.mxu0 %v645
        %675 = vmatprep.subr.bf16.mxu0 0
        %676 = vmatpush1.bf16.msra.mxu0 %v644
        %677 = vmatprep.subr.bf16.mxu0 0
        %678 = vmatpush1.bf16.msra.mxu0 %v643
        %679 = vmatprep.subr.bf16.mxu0 0
        %680 = vmatpush1.bf16.msra.mxu0 %v642
        %681 = vmatprep.subr.bf16.mxu0 0
        %682 = vmatpush1.bf16.msra.mxu0 %v641
        %683 = vmatprep.subr.bf16.mxu0 0
        %684 = vmatpush1.bf16.msra.mxu0 %v640
        %685 = vmatprep.subr.bf16.mxu0 0
        %686 = vmatpush1.bf16.msra.mxu0 %v639
        %687 = vmatprep.subr.bf16.mxu0 0
        %688 = vmatpush2.bf16.msra.mxu0 %v654
        %689 = vmatprep.subr.bf16.mxu0 0
        %690 = vmatpush2.bf16.msra.mxu0 %v653
        %691 = vmatprep.subr.bf16.mxu0 0
        %692 = vmatpush2.bf16.msra.mxu0 %v652
        %693 = vmatprep.subr.bf16.mxu0 0
        %694 = vmatpush2.bf16.msra.mxu0 %v651
        %695 = vmatprep.subr.bf16.mxu0 0
        %696 = vmatpush2.bf16.msra.mxu0 %v650
        %697 = vmatprep.subr.bf16.mxu0 0
        %698 = vmatpush2.bf16.msra.mxu0 %v649
        %699 = vmatprep.subr.bf16.mxu0 0
        %700 = vmatpush2.bf16.msra.mxu0 %v648
        %701 = vmatprep.subr.bf16.mxu0 0
        %702 = vmatpush2.bf16.msra.mxu0 %v647
        %703 = vmatprep.mubr.bf16.mxu0 %v535
        %704 = vmatmul.mubr.bf16.gmra.mxu0 %v534
        %v705 = vpop.f32.mrf.mxu0
        %v706 = vadd.f32 %v573, %v705
        %v707 = vpop.f32.mrf.mxu0
        %v708 = vpop.f32.mrf.mxu0
        %v709 = vpop.f32.mrf.mxu0
        %710 = vdwg.mxu0
        %711 = vst [vmem:[%s400] sm:$0xff] %v706
        %s712 = sand.u32 %s215, 1
        %s713 = scalar_lea.sflag [#allocation4], %s712
        %s714 = sand.u32 %s215, 1
        %s715 = smul.addr %s714, 8
        %s716 = scalar_lea.vmem [#allocation11], %s715
        // Predicated region
        $region73: #{tpu_custom_call.1} parent=51 // pred_check
          %p717 = pneg %p225
        $region74: #{tpu_custom_call.1} parent=51 // pred_check_branch
          %719 = sbr.rel (%p717) target = $region76
        $region75: #{tpu_custom_call.1} parent=51 // pred_region
          %s721 = ssub.s32 128, 128
          %722 = vsyncadd %s713, %s721
          %s723 = smul.addr %s29, 128
          %s724 = scalar_lea.hbm %s8, %s723
          %s726 = sshll.u32 %s716, 4
          %s727 = int_to_ptr.vmem [resolvable:$true] %s726
          %729 = dma.vmem_to_hbm [thread:$0]  %s727, 128, %s724, %s713
        $region76: #{tpu_custom_call.1} parent=51 // pred_fallthru
          _
      $region52: #{tpu_custom_call.1} parent=5 // pred_fallthru
        _
      %p730 = scmp.le.s32.totalorder 2, %s24
      // Predicated region
      $region77: #{tpu_custom_call.1} parent=5 // pred_check
        %p731 = pneg %p730
      $region78: #{tpu_custom_call.1} parent=5 // pred_check_branch
        %733 = sbr.rel (%p731) target = $region80
      $region79: #{tpu_custom_call.1} parent=5 // pred_region
        %s734 = ssub.s32 %s24, 2
        // Predicated region
        $region81: #{tpu_custom_call.1} parent=79 // pred_check
          %p735 = pneg %p231
        $region82: #{tpu_custom_call.1} parent=79 // pred_check_branch
          %737 = sbr.rel (%p735) target = $region84
        $region83: #{tpu_custom_call.1} parent=79 // pred_region
          %s738 = sand.u32 %s216, 1
          %s739 = scalar_lea.sflag [#allocation4], %s738
          %s740 = sand.u32 %s216, 1
          %s741 = smul.addr %s740, 8
          %s742 = scalar_lea.vmem [#allocation11], %s741
          %743 = dma.done %s739, 128
        $region84: #{tpu_custom_call.1} parent=79 // pred_fallthru
          _
      $region80: #{tpu_custom_call.1} parent=5 // pred_fallthru
        _
    $region6: #{tpu_custom_call.1} parent=1 // loop_footer
      %s28 = sadd.s32 1, %s24
    $region7: #{tpu_custom_call.1} parent=1 // loop_footer_branch
      %23 = sbr.rel target = $region3
    $region8: #{tpu_custom_call.1} parent=1 // loop_exit
      _
    %744 = vsyncpa [#allocation3], 1
    %s745 = scalar_lea.sflag [#allocation3], 1
    %746 = vsyncpa %s745, 1
    %747 = vsyncpa [#allocation6], 1
    %s748 = scalar_lea.sflag [#allocation6], 1
    %749 = vsyncpa %s748, 1
    %750 = vsyncpa [#allocation9], 1
    %751 = vsyncpa [#allocation4], 1
    %s752 = scalar_lea.sflag [#allocation4], 1
    %753 = vsyncpa %s752, 1

// kernel: tpu_custom_call.1
$region0: #{tpu_custom_call.1}
  #allocation0 [shape = 'u32[]', space=smem, size = 0x4, offset = 0x4, fixed_abs, tag = 'smem constant byte address 0x4 - core index']
  #allocation1 [shape = 'u32[144,128]{1,0:T(1,128)}', space=vmem, size = 0x12000, scoped, tag = 'internal scratch']
  %s0 = inlined_call_operand.hbm [shape: f32[16,32], index: 0, kind: input, shape index: {}]
  %s1 = inlined_call_operand.hbm [shape: f32[16,16], index: 1, kind: input, shape index: {}]
  %s2 = inlined_call_operand.hbm [shape: bf16[32,128], index: 2, kind: input, shape index: {}]
  %s3 = inlined_call_operand.vmem [shape: f32[1,128], index: 3, kind: input, shape index: {}]
  %s4 = inlined_call_operand.hbm [shape: bf16[16,128], index: 4, kind: input, shape index: {}]
  %s5 = inlined_call_operand.vmem [shape: f32[1,128], index: 5, kind: input, shape index: {}]
  %s6 = inlined_call_operand.hbm [shape: bf16[256,128], index: 6, kind: input, shape index: {}]
  %s7 = inlined_call_operand.vmem [shape: f32[1,128], index: 7, kind: input, shape index: {}]
  %s8 = inlined_call_operand.hbm [shape: f32[16,128], index: 8, kind: output, shape index: {}]
  %s9 = sld [smem:[#allocation0]]
  $region85: #{tpu_custom_call.1} parent=0
    _
  %s11 = ssub.s32 1, %s9
  %s12 = scalar_select 0, %s11, %s9
  $region1: #{tpu_custom_call.1} parent=0
    #allocation2 [shape = 'u8[8192]{0}', space=vmem, size = 0x2000, scoped, tag = 'input window, operand 0']
    #allocation3 [shape = 's32[2]{0}', space=sflag, size = 0x8, scoped, tag = 'scoped memory for tpu_custom_call.1']
    #allocation4 [shape = 's32[2]{0}', space=sflag, size = 0x8, scoped, tag = 'scoped memory for tpu_custom_call.1']
    #allocation5 [shape = 'u8[8192]{0}', space=vmem, size = 0x2000, scoped, tag = 'input window, operand 1']
    #allocation6 [shape = 's32[2]{0}', space=sflag, size = 0x8, scoped, tag = 'scoped memory for tpu_custom_call.1']
    #allocation7 [shape = 'u8[8192]{0}', space=vmem, size = 0x2000, scoped, tag = 'input window, operand 2, single buffered']
    #allocation8 [shape = 'u8[4096]{0}', space=vmem, size = 0x1000, scoped, tag = 'input window, operand 4, single buffered']
    #allocation9 [shape = 's32[1]{0}', space=sflag, size = 0x4, scoped, tag = 'scoped memory for tpu_custom_call.1']
    #allocation10 [shape = 'u8[65536]{0}', space=vmem, size = 0x10000, scoped, tag = 'input window, operand 6, single buffered']
    #allocation11 [shape = 'u8[8192]{0}', space=vmem, size = 0x2000, scoped, tag = 'output window, operand 0']
    %13 = vsyncpa [#allocation3], 0
    %s14 = scalar_lea.sflag [#allocation3], 1
    %15 = vsyncpa %s14, 0
    %16 = vsyncpa [#allocation6], 0
    %s17 = scalar_lea.sflag [#allocation6], 1
    %18 = vsyncpa %s17, 0
    %19 = vsyncpa [#allocation9], 0
    %20 = vsyncpa [#allocation4], 0
    %s21 = scalar_lea.sflag [#allocation4], 1
    %22 = vsyncpa %s21, 0
    loop: start=0, step=1, limit=4
    $region2: #{tpu_custom_call.1} parent=1 // loop_pre_header
      _
    $region3: #{tpu_custom_call.1} parent=1 // loop_header
      %s24 = sphi 0, %s28
      %p25 = scmp.ge.s32.totalorder %s24, 4
      %s34 = sphi 0, %s36
      %s37 = sphi 0, %s34
      %s38 = sphi 0, %s37
      %s54 = sphi 0, %s38
      %s60 = sphi 0, %s62
      %s63 = sphi 0, %s60
      %s64 = sphi 0, %s63
      %s80 = sphi 0, %s64
      %s84 = sphi 0, %s84
      %s86 = sphi 0, %s84
      %s87 = sphi 0, %s86
      %s101 = sphi 0, %s87
      %s105 = sphi 0, %s105
      %s107 = sphi 0, %s105
      %s108 = sphi 0, %s107
      %s122 = sphi 0, %s108
      %s126 = sphi 0, %s126
      %s128 = sphi 0, %s126
      %s129 = sphi 0, %s128
      %s143 = sphi 0, %s129
      %s147 = sphi 0, %s147
      %s149 = sphi 0, %s147
      %s150 = sphi 0, %s149
      %s164 = sphi 0, %s150
      %s168 = sphi 0, %s168
      %s170 = sphi 0, %s168
      %s171 = sphi 0, %s170
      %s185 = sphi 0, %s171
      %s189 = sphi 0, %s189
      %s191 = sphi 0, %s189
      %s192 = sphi 0, %s191
      %s206 = sphi 0, %s192
      %s212 = sphi 0, %s214
      %s215 = sphi 0, %s212
      %s216 = sphi 0, %s215
      %s232 = sphi 0, %s216
    $region4: #{tpu_custom_call.1} parent=1 // loop_header_branch
      %27 = sbr.rel (%p25) target = $region8
    $region5: #{tpu_custom_call.1} parent=1 // loop_body
      %s29 = ssub.s32 %s24, 1
      %s30 = ssub.s32 %s24, 2
      %s31 = sadd.s32 %s24, 1
      %s32 = ssub.s32 %s24, %s31
      %p33 = scmp.eq.s32.totalorder %s32, 0
      %s35 = sadd.s32 %s34, 1
      %s36 = scalar_select %p33, %s34, %s35
      %p39 = pneg %p33
      %p40 = scmp.eq.s32.totalorder %s24, 1
      %p41 = por %p39, %p40
      %p42 = scmp.ne.s32.totalorder %s34, %s37
      %p43 = scmp.eq.s32.totalorder %s24, 0
      %p44 = por %p42, %p43
      %p45 = scmp.ne.s32.totalorder %s34, %s37
      %p46 = scmp.eq.s32.totalorder %s29, 1
      %p47 = por %p45, %p46
      %p48 = scmp.ne.s32.totalorder %s37, %s38
      %p49 = scmp.eq.s32.totalorder %s29, 0
      %p50 = por %p48, %p49
      %p51 = scmp.ne.s32.totalorder %s37, %s38
      %p52 = scmp.eq.s32.totalorder %s30, 1
      %p53 = por %p51, %p52
      %p55 = scmp.ne.s32.totalorder %s38, %s54
      %p56 = scmp.eq.s32.totalorder %s30, 0
      %p57 = por %p55, %p56
      %s58 = ssub.s32 %s24, %s31
      %p59 = scmp.eq.s32.totalorder %s58, 0
      %s61 = sadd.s32 %s60, 1
      %s62 = scalar_select %p59, %s60, %s61
      %p65 = pneg %p59
      %p66 = scmp.eq.s32.totalorder %s24, 1
      %p67 = por %p65, %p66
      %p68 = scmp.ne.s32.totalorder %s60, %s63
      %p69 = scmp.eq.s32.totalorder %s24, 0
      %p70 = por %p68, %p69
      %p71 = scmp.ne.s32.totalorder %s60, %s63
      %p72 = scmp.eq.s32.totalorder %s29, 1
      %p73 = por %p71, %p72
      %p74 = scmp.ne.s32.totalorder %s63, %s64
      %p75 = scmp.eq.s32.totalorder %s29, 0
      %p76 = por %p74, %p75
      %p77 = scmp.ne.s32.totalorder %s63, %s64
      %p78 = scmp.eq.s32.totalorder %s30, 1
      %p79 = por %p77, %p78
      %p81 = scmp.ne.s32.totalorder %s64, %s80
      %p82 = scmp.eq.s32.totalorder %s30, 0
      %p83 = por %p81, %p82
      %s85 = sadd.s32 %s84, 1
      %p88 = scmp.eq.s32.totalorder %s24, 1
      %p89 = scmp.ne.s32.totalorder %s84, %s86
      %p90 = scmp.eq.s32.totalorder %s24, 0
      %p91 = por %p89, %p90
      %p92 = scmp.ne.s32.totalorder %s84, %s86
      %p93 = scmp.eq.s32.totalorder %s29, 1
      %p94 = por %p92, %p93
      %p95 = scmp.ne.s32.totalorder %s86, %s87
      %p96 = scmp.eq.s32.totalorder %s29, 0
      %p97 = por %p95, %p96
      %p98 = scmp.ne.s32.totalorder %s86, %s87
      %p99 = scmp.eq.s32.totalorder %s30, 1
      %p100 = por %p98, %p99
      %p102 = scmp.ne.s32.totalorder %s87, %s101
      %p103 = scmp.eq.s32.totalorder %s30, 0
      %p104 = por %p102, %p103
      %s106 = sadd.s32 %s105, 1
      %p109 = scmp.eq.s32.totalorder %s24, 1
      %p110 = scmp.ne.s32.totalorder %s105, %s107
      %p111 = scmp.eq.s32.totalorder %s24, 0
      %p112 = por %p110, %p111
      %p113 = scmp.ne.s32.totalorder %s105, %s107
      %p114 = scmp.eq.s32.totalorder %s29, 1
      %p115 = por %p113, %p114
      %p116 = scmp.ne.s32.totalorder %s107, %s108
      %p117 = scmp.eq.s32.totalorder %s29, 0
      %p118 = por %p116, %p117
      %p119 = scmp.ne.s32.totalorder %s107, %s108
      %p120 = scmp.eq.s32.totalorder %s30, 1
      %p121 = por %p119, %p120
      %p123 = scmp.ne.s32.totalorder %s108, %s122
      %p124 = scmp.eq.s32.totalorder %s30, 0
      %p125 = por %p123, %p124
      %s127 = sadd.s32 %s126, 1
      %p130 = scmp.eq.s32.totalorder %s24, 1
      %p131 = scmp.ne.s32.totalorder %s126, %s128
      %p132 = scmp.eq.s32.totalorder %s24, 0
      %p133 = por %p131, %p132
      %p134 = scmp.ne.s32.totalorder %s126, %s128
      %p135 = scmp.eq.s32.totalorder %s29, 1
      %p136 = por %p134, %p135
      %p137 = scmp.ne.s32.totalorder %s128, %s129
      %p138 = scmp.eq.s32.totalorder %s29, 0
      %p139 = por %p137, %p138
      %p140 = scmp.ne.s32.totalorder %s128, %s129
      %p141 = scmp.eq.s32.totalorder %s30, 1
      %p142 = por %p140, %p141
      %p144 = scmp.ne.s32.totalorder %s129, %s143
      %p145 = scmp.eq.s32.totalorder %s30, 0
      %p146 = por %p144, %p145
      %s148 = sadd.s32 %s147, 1
      %p151 = scmp.eq.s32.totalorder %s24, 1
      %p152 = scmp.ne.s32.totalorder %s147, %s149
      %p153 = scmp.eq.s32.totalorder %s24, 0
      %p154 = por %p152, %p153
      %p155 = scmp.ne.s32.totalorder %s147, %s149
      %p156 = scmp.eq.s32.totalorder %s29, 1
      %p157 = por %p155, %p156
      %p158 = scmp.ne.s32.totalorder %s149, %s150
      %p159 = scmp.eq.s32.totalorder %s29, 0
      %p160 = por %p158, %p159
      %p161 = scmp.ne.s32.totalorder %s149, %s150
      %p162 = scmp.eq.s32.totalorder %s30, 1
      %p163 = por %p161, %p162
      %p165 = scmp.ne.s32.totalorder %s150, %s164
      %p166 = scmp.eq.s32.totalorder %s30, 0
      %p167 = por %p165, %p166
      %s169 = sadd.s32 %s168, 1
      %p172 = scmp.eq.s32.totalorder %s24, 1
      %p173 = scmp.ne.s32.totalorder %s168, %s170
      %p174 = scmp.eq.s32.totalorder %s24, 0
      %p175 = por %p173, %p174
      %p176 = scmp.ne.s32.totalorder %s168, %s170
      %p177 = scmp.eq.s32.totalorder %s29, 1
      %p178 = por %p176, %p177
      %p179 = scmp.ne.s32.totalorder %s170, %s171
      %p180 = scmp.eq.s32.totalorder %s29, 0
      %p181 = por %p179, %p180
      %p182 = scmp.ne.s32.totalorder %s170, %s171
      %p183 = scmp.eq.s32.totalorder %s30, 1
      %p184 = por %p182, %p183
      %p186 = scmp.ne.s32.totalorder %s171, %s185
      %p187 = scmp.eq.s32.totalorder %s30, 0
      %p188 = por %p186, %p187
      %s190 = sadd.s32 %s189, 1
      %p193 = scmp.eq.s32.totalorder %s24, 1
      %p194 = scmp.ne.s32.totalorder %s189, %s191
      %p195 = scmp.eq.s32.totalorder %s24, 0
      %p196 = por %p194, %p195
      %p197 = scmp.ne.s32.totalorder %s189, %s191
      %p198 = scmp.eq.s32.totalorder %s29, 1
      %p199 = por %p197, %p198
      %p200 = scmp.ne.s32.totalorder %s191, %s192
      %p201 = scmp.eq.s32.totalorder %s29, 0
      %p202 = por %p200, %p201
      %p203 = scmp.ne.s32.totalorder %s191, %s192
      %p204 = scmp.eq.s32.totalorder %s30, 1
      %p205 = por %p203, %p204
      %p207 = scmp.ne.s32.totalorder %s192, %s206
      %p208 = scmp.eq.s32.totalorder %s30, 0
      %p209 = por %p207, %p208
      %s210 = ssub.s32 %s24, %s31
      %p211 = scmp.eq.s32.totalorder %s210, 0
      %s213 = sadd.s32 %s212, 1
      %s214 = scalar_select %p211, %s212, %s213
      %p217 = pneg %p211
      %p218 = scmp.eq.s32.totalorder %s24, 1
      %p219 = por %p217, %p218
      %p220 = scmp.ne.s32.totalorder %s212, %s215
      %p221 = scmp.eq.s32.totalorder %s24, 0
      %p222 = por %p220, %p221
      %p223 = scmp.ne.s32.totalorder %s212, %s215
      %p224 = scmp.eq.s32.totalorder %s29, 1
      %p225 = por %p223, %p224
      %p226 = scmp.ne.s32.totalorder %s215, %s216
      %p227 = scmp.eq.s32.totalorder %s29, 0
      %p228 = por %p226, %p227
      %p229 = scmp.ne.s32.totalorder %s215, %s216
      %p230 = scmp.eq.s32.totalorder %s30, 1
      %p231 = por %p229, %p230
      %p233 = scmp.ne.s32.totalorder %s216, %s232
      %p234 = scmp.eq.s32.totalorder %s30, 0
      %p235 = por %p233, %p234
      %p236 = scmp.le.s32.totalorder 1, %s24
      %p237 = scmp.lt.s32.totalorder %s24, 3
      %p238 = pnand %p236, %p237
      %p239 = pneg %p238
      // Predicated region
      $region9: #{tpu_custom_call.1} parent=5 // pred_check
        _
      $region10: #{tpu_custom_call.1} parent=5 // pred_check_branch
        %241 = sbr.rel (%p238) target = $region12
      $region11: #{tpu_custom_call.1} parent=5 // pred_region
        %s242 = ssub.s32 %s24, 1
        // Predicated region
        $region13: #{tpu_custom_call.1} parent=11 // pred_check
          %p243 = pneg %p97
        $region14: #{tpu_custom_call.1} parent=11 // pred_check_branch
          %245 = sbr.rel (%p243) target = $region16
        $region15: #{tpu_custom_call.1} parent=11 // pred_region
          %s247 = ssub.s32 256, 256
          %248 = vsyncadd [#allocation6], %s247
          %s249 = sshll.u32 [#allocation7], 4
          %s250 = int_to_ptr.vmem [resolvable:$true] %s249
          %255 = dma.hbm_to_vmem [thread:$0]  %s2, 256, %s250, [#allocation6], 64, 64, 4
        $region16: #{tpu_custom_call.1} parent=11 // pred_fallthru
          _
        // Predicated region
        $region17: #{tpu_custom_call.1} parent=11 // pred_check
          %p256 = pneg %p118
        $region18: #{tpu_custom_call.1} parent=11 // pred_check_branch
          %258 = sbr.rel (%p256) target = $region20
        $region19: #{tpu_custom_call.1} parent=11 // pred_region
          _
        $region20: #{tpu_custom_call.1} parent=11 // pred_fallthru
          _
        // Predicated region
        $region21: #{tpu_custom_call.1} parent=11 // pred_check
          %p259 = pneg %p139
        $region22: #{tpu_custom_call.1} parent=11 // pred_check_branch
          %261 = sbr.rel (%p259) target = $region24
        $region23: #{tpu_custom_call.1} parent=11 // pred_region
          %s263 = ssub.s32 128, 128
          %264 = vsyncadd [#allocation9], %s263
          %s265 = sshll.u32 [#allocation8], 4
          %s266 = int_to_ptr.vmem [resolvable:$true] %s265
          %271 = dma.hbm_to_vmem [thread:$0]  %s4, 128, %s266, [#allocation9], 64, 64, 4
        $region24: #{tpu_custom_call.1} parent=11 // pred_fallthru
          _
        // Predicated region
        $region25: #{tpu_custom_call.1} parent=11 // pred_check
          %p272 = pneg %p160
        $region26: #{tpu_custom_call.1} parent=11 // pred_check_branch
          %274 = sbr.rel (%p272) target = $region28
        $region27: #{tpu_custom_call.1} parent=11 // pred_region
          _
        $region28: #{tpu_custom_call.1} parent=11 // pred_fallthru
          _
        // Predicated region
        $region29: #{tpu_custom_call.1} parent=11 // pred_check
          %p275 = pneg %p181
        $region30: #{tpu_custom_call.1} parent=11 // pred_check_branch
          %277 = sbr.rel (%p275) target = $region32
        $region31: #{tpu_custom_call.1} parent=11 // pred_region
          %s279 = ssub.s32 2048, 2048
          %280 = vsyncadd [#allocation9], %s279
          %s281 = sshll.u32 [#allocation10], 4
          %s282 = int_to_ptr.vmem [resolvable:$true] %s281
          %287 = dma.hbm_to_vmem [thread:$0]  %s6, 2048, %s282, [#allocation9], 64, 64, 4
        $region32: #{tpu_custom_call.1} parent=11 // pred_fallthru
          _
        // Predicated region
        $region33: #{tpu_custom_call.1} parent=11 // pred_check
          %p288 = pneg %p202
        $region34: #{tpu_custom_call.1} parent=11 // pred_check_branch
          %290 = sbr.rel (%p288) target = $region36
        $region35: #{tpu_custom_call.1} parent=11 // pred_region
          _
        $region36: #{tpu_custom_call.1} parent=11 // pred_fallthru
          _
      $region12: #{tpu_custom_call.1} parent=5 // pred_fallthru
        _
      %p291 = scmp.lt.s32.totalorder %s24, 2
      // Predicated region
      $region37: #{tpu_custom_call.1} parent=5 // pred_check
        %p292 = pneg %p291
      $region38: #{tpu_custom_call.1} parent=5 // pred_check_branch
        %294 = sbr.rel (%p292) target = $region40
      $region39: #{tpu_custom_call.1} parent=5 // pred_region
        // Predicated region
        $region41: #{tpu_custom_call.1} parent=39 // pred_check
          %p295 = pneg %p44
        $region42: #{tpu_custom_call.1} parent=39 // pred_check_branch
          %297 = sbr.rel (%p295) target = $region44
        $region43: #{tpu_custom_call.1} parent=39 // pred_region
          %s298 = sand.u32 %s34, 1
          %s299 = scalar_lea.sflag [#allocation3], %s298
          %s300 = sand.u32 %s34, 1
          %s301 = smul.addr %s300, 8
          %s302 = scalar_lea.vmem [#allocation2], %s301
          %s304 = ssub.s32 128, 128
          %305 = vsyncadd %s299, %s304
          %s306 = smul.addr %s24, 128
          %s307 = scalar_lea.hbm %s0, %s306
          %s309 = sshll.u32 %s302, 4
          %s310 = int_to_ptr.vmem [resolvable:$true] %s309
          %312 = dma.hbm_to_vmem [thread:$0]  %s307, 128, %s310, %s299
        $region44: #{tpu_custom_call.1} parent=39 // pred_fallthru
          _
        // Predicated region
        $region45: #{tpu_custom_call.1} parent=39 // pred_check
          %p313 = pneg %p70
        $region46: #{tpu_custom_call.1} parent=39 // pred_check_branch
          %315 = sbr.rel (%p313) target = $region48
        $region47: #{tpu_custom_call.1} parent=39 // pred_region
          %s316 = sand.u32 %s24, 1
          %s317 = scalar_lea.sflag [#allocation6], %s316
          %s318 = sand.u32 %s60, 1
          %s319 = smul.addr %s318, 8
          %s320 = scalar_lea.vmem [#allocation5], %s319
          %s322 = ssub.s32 128, 128
          %323 = vsyncadd %s317, %s322
          %s324 = smul.addr %s24, 128
          %s325 = scalar_lea.hbm %s1, %s324
          %s327 = sshll.u32 %s320, 4
          %s328 = int_to_ptr.vmem [resolvable:$true] %s327
          %330 = dma.hbm_to_vmem [thread:$0]  %s325, 128, %s328, %s317
        $region48: #{tpu_custom_call.1} parent=39 // pred_fallthru
          _
      $region40: #{tpu_custom_call.1} parent=5 // pred_fallthru
        _
      %p331 = scmp.le.s32.totalorder 1, %s24
      %p332 = scmp.lt.s32.totalorder %s24, 3
      %p333 = pnand %p331, %p332
      %p334 = pneg %p333
      // Predicated region
      $region49: #{tpu_custom_call.1} parent=5 // pred_check
        _
      $region50: #{tpu_custom_call.1} parent=5 // pred_check_branch
        %336 = sbr.rel (%p333) target = $region52
      $region51: #{tpu_custom_call.1} parent=5 // pred_region
        %s337 = ssub.s32 %s24, 1
        %s338 = sand.u32 %s37, 1
        %s339 = scalar_lea.sflag [#allocation3], %s338
        %s340 = sand.u32 %s37, 1
        %s341 = smul.addr %s340, 8
        %s342 = scalar_lea.vmem [#allocation2], %s341
        // Predicated region
        $region53: #{tpu_custom_call.1} parent=51 // pred_check
          %p343 = pneg %p50
        $region54: #{tpu_custom_call.1} parent=51 // pred_check_branch
          %345 = sbr.rel (%p343) target = $region56
        $region55: #{tpu_custom_call.1} parent=51 // pred_region
          %346 = dma.done %s339, 128
        $region56: #{tpu_custom_call.1} parent=51 // pred_fallthru
          _
        %s347 = sand.u32 %s29, 1
        %s348 = scalar_lea.sflag [#allocation6], %s347
        %s349 = sand.u32 %s63, 1
        %s350 = smul.addr %s349, 8
        %s351 = scalar_lea.vmem [#allocation5], %s350
        // Predicated region
        $region57: #{tpu_custom_call.1} parent=51 // pred_check
          %p352 = pneg %p76
        $region58: #{tpu_custom_call.1} parent=51 // pred_check_branch
          %354 = sbr.rel (%p352) target = $region60
        $region59: #{tpu_custom_call.1} parent=51 // pred_region
          %355 = dma.done %s348, 128
        $region60: #{tpu_custom_call.1} parent=51 // pred_fallthru
          _
        // Predicated region
        $region61: #{tpu_custom_call.1} parent=51 // pred_check
          %p356 = pneg %p97
        $region62: #{tpu_custom_call.1} parent=51 // pred_check_branch
          %358 = sbr.rel (%p356) target = $region64
        $region63: #{tpu_custom_call.1} parent=51 // pred_region
          %359 = dma.done [#allocation6], 256
        $region64: #{tpu_custom_call.1} parent=51 // pred_fallthru
          _
        // Predicated region
        $region65: #{tpu_custom_call.1} parent=51 // pred_check
          %p360 = pneg %p139
        $region66: #{tpu_custom_call.1} parent=51 // pred_check_branch
          %362 = sbr.rel (%p360) target = $region68
        $region67: #{tpu_custom_call.1} parent=51 // pred_region
          %363 = dma.done [#allocation9], 128
        $region68: #{tpu_custom_call.1} parent=51 // pred_fallthru
          _
        // Predicated region
        $region69: #{tpu_custom_call.1} parent=51 // pred_check
          %p364 = pneg %p181
        $region70: #{tpu_custom_call.1} parent=51 // pred_check_branch
          %366 = sbr.rel (%p364) target = $region72
        $region71: #{tpu_custom_call.1} parent=51 // pred_region
          %367 = dma.done [#allocation9], 2048
        $region72: #{tpu_custom_call.1} parent=51 // pred_fallthru
          _
        %s368 = sand.u32 %s37, 1
        %s369 = scalar_lea.sflag [#allocation3], %s368
        %s370 = sand.u32 %s37, 1
        %s371 = smul.addr %s370, 8
        %s372 = scalar_lea.vmem [#allocation2], %s371
        %p373 = pneg %p50
        %p374 = pneg %p47
        %s375 = sand.u32 %s29, 1
        %s376 = scalar_lea.sflag [#allocation6], %s375
        %s377 = sand.u32 %s63, 1
        %s378 = smul.addr %s377, 8
        %s379 = scalar_lea.vmem [#allocation5], %s378
        %p380 = pneg %p76
        %p381 = pneg %p73
        %p382 = pneg %p97
        %p383 = pneg %p94
        %p384 = pneg %p118
        %p385 = pneg %p115
        %p386 = pneg %p139
        %p387 = pneg %p136
        %p388 = pneg %p160
        %p389 = pneg %p157
        %p390 = pneg %p181
        %p391 = pneg %p178
        %p392 = pneg %p202
        %p393 = pneg %p199
        %p394 = pneg %p228
        %p395 = pneg %p225
        %s396 = sand.u32 %s215, 1
        %s397 = scalar_lea.sflag [#allocation4], %s396
        %s398 = sand.u32 %s215, 1
        %s399 = smul.addr %s398, 8
        %s400 = scalar_lea.vmem [#allocation11], %s399
        %v402 = vld [vmem:[%s342] sm:$0xff]
        %v403 = vpack.c.bf16 %v402, %v402
        %v404 = vld [vmem:[#allocation7] sm:$0xf]
        %v405 = vld [vmem:[#allocation7 + $0x4] sm:$0xf]
        %v406 = vld [vmem:[#allocation7 + $0x8] sm:$0xf]
        %v407 = vld [vmem:[#allocation7 + $0xc] sm:$0xf]
        %v408 = vld [vmem:[%s3] sm:$0x1]
        %v410 = vlaneseq
        %v411 = vshrl.u32 %v410, 7
        %v412 = vsub.s32 0, %v411
        %v413 = vrot.slane %v408, %v412
        %v419 = vunpack.c.l.b16 %v404
        %v420 = vunpack.c.l.b16 %v405
        %v421 = vunpack.c.l.b16 %v406
        %v422 = vunpack.c.l.b16 %v407
        %v423 = vpack.c.b16 %v420, %v419
        %v424 = vpack.c.b16 %v422, %v421
        %vm427 = vcmask 261120
        %v429 = vsel %vm427, %v403, 0
        %431 = vmatprep.subr.bf16.mxu0 0
        %432 = vmatpush1.bf16.msra.mxu0 0
        %433 = vmatprep.subr.bf16.mxu0 0
        %434 = vmatpush1.bf16.msra.mxu0 0
        %435 = vmatprep.subr.bf16.mxu0 0
        %436 = vmatpush1.bf16.msra.mxu0 0
        %437 = vmatprep.subr.bf16.mxu0 0
        %438 = vmatpush1.bf16.msra.mxu0 0
        %439 = vmatprep.subr.bf16.mxu0 0
        %440 = vmatpush1.bf16.msra.mxu0 0
        %441 = vmatprep.subr.bf16.mxu0 0
        %442 = vmatpush1.bf16.msra.mxu0 0
        %443 = vmatprep.subr.bf16.mxu0 0
        %444 = vmatpush1.bf16.msra.mxu0 %v424
        %445 = vmatprep.subr.bf16.mxu0 0
        %446 = vmatpush1.bf16.msra.mxu0 %v423
        %447 = vmatprep.subr.bf16.mxu0 0
        %448 = vmatpush2.bf16.msra.mxu0 0
        %449 = vmatprep.subr.bf16.mxu0 0
        %450 = vmatpush2.bf16.msra.mxu0 0
        %451 = vmatprep.subr.bf16.mxu0 0
        %452 = vmatpush2.bf16.msra.mxu0 0
        %453 = vmatprep.subr.bf16.mxu0 0
        %454 = vmatpush2.bf16.msra.mxu0 0
        %455 = vmatprep.subr.bf16.mxu0 0
        %456 = vmatpush2.bf16.msra.mxu0 0
        %457 = vmatprep.subr.bf16.mxu0 0
        %458 = vmatpush2.bf16.msra.mxu0 0
        %459 = vmatprep.subr.bf16.mxu0 0
        %460 = vmatpush2.bf16.msra.mxu0 0
        %461 = vmatprep.subr.bf16.mxu0 0
        %462 = vmatpush2.bf16.msra.mxu0 0
        %463 = vmatprep.mubr.bf16.mxu0 0
        %464 = vmatmul.mubr.bf16.gmra.mxu0 %v429
        %v465 = vpop.f32.mrf.mxu0
        %v466 = vadd.f32 %v413, %v465
        %v467 = vpop.f32.mrf.mxu0
        %v468 = vpop.f32.mrf.mxu0
        %v469 = vpop.f32.mrf.mxu0
        %470 = vdwg.mxu0
        %v471 = vtanh.pop %v466
        %v472 = vld [vmem:[%s351] sm:$0xff]
        %v473 = vpack.c.bf16 %v472, %v472
        %v474 = vld [vmem:[#allocation8] sm:$0xf]
        %v475 = vld [vmem:[#allocation8 + $0x4] sm:$0xf]
        %v476 = vld [vmem:[%s5] sm:$0x1]
        %v478 = vlaneseq
        %v479 = vshrl.u32 %v478, 7
        %v480 = vsub.s32 0, %v479
        %v481 = vrot.slane %v476, %v480
        %v485 = vunpack.c.l.b16 %v474
        %v486 = vunpack.c.l.b16 %v475
        %v487 = vpack.c.b16 %v486, %v485
        %vm489 = vcmask 130048
        %v491 = vsel %vm489, %v473, 0
        %493 = vmatprep.subr.bf16.mxu0 0
        %494 = vmatpush1.bf16.msra.mxu0 0
        %495 = vmatprep.subr.bf16.mxu0 0
        %496 = vmatpush1.bf16.msra.mxu0 0
        %497 = vmatprep.subr.bf16.mxu0 0
        %498 = vmatpush1.bf16.msra.mxu0 0
        %499 = vmatprep.subr.bf16.mxu0 0
        %500 = vmatpush1.bf16.msra.mxu0 0
        %501 = vmatprep.subr.bf16.mxu0 0
        %502 = vmatpush1.bf16.msra.mxu0 0
        %503 = vmatprep.subr.bf16.mxu0 0
        %504 = vmatpush1.bf16.msra.mxu0 0
        %505 = vmatprep.subr.bf16.mxu0 0
        %506 = vmatpush1.bf16.msra.mxu0 0
        %507 = vmatprep.subr.bf16.mxu0 0
        %508 = vmatpush1.bf16.msra.mxu0 %v487
        %509 = vmatprep.subr.bf16.mxu0 0
        %510 = vmatpush2.bf16.msra.mxu0 0
        %511 = vmatprep.subr.bf16.mxu0 0
        %512 = vmatpush2.bf16.msra.mxu0 0
        %513 = vmatprep.subr.bf16.mxu0 0
        %514 = vmatpush2.bf16.msra.mxu0 0
        %515 = vmatprep.subr.bf16.mxu0 0
        %516 = vmatpush2.bf16.msra.mxu0 0
        %517 = vmatprep.subr.bf16.mxu0 0
        %518 = vmatpush2.bf16.msra.mxu0 0
        %519 = vmatprep.subr.bf16.mxu0 0
        %520 = vmatpush2.bf16.msra.mxu0 0
        %521 = vmatprep.subr.bf16.mxu0 0
        %522 = vmatpush2.bf16.msra.mxu0 0
        %523 = vmatprep.subr.bf16.mxu0 0
        %524 = vmatpush2.bf16.msra.mxu0 0
        %525 = vmatprep.mubr.bf16.mxu0 0
        %526 = vmatmul.mubr.bf16.gmra.mxu0 %v491
        %v527 = vpop.f32.mrf.mxu0
        %v528 = vadd.f32 %v481, %v527
        %v529 = vpop.f32.mrf.mxu0
        %v530 = vpop.f32.mrf.mxu0
        %v531 = vpop.f32.mrf.mxu0
        %532 = vdwg.mxu0
        %v533 = vtanh.pop %v528
        %v534 = vpack.c.bf16 %v471, %v471
        %v535 = vpack.c.bf16 %v533, %v533
        %v536 = vld [vmem:[#allocation10] sm:$0xf]
        %v537 = vld [vmem:[#allocation10 + $0x4] sm:$0xf]
        %v538 = vld [vmem:[#allocation10 + $0x8] sm:$0xf]
        %v539 = vld [vmem:[#allocation10 + $0xc] sm:$0xf]
        %v540 = vld [vmem:[#allocation10 + $0x10] sm:$0xf]
        %v541 = vld [vmem:[#allocation10 + $0x14] sm:$0xf]
        %v542 = vld [vmem:[#allocation10 + $0x18] sm:$0xf]
        %v543 = vld [vmem:[#allocation10 + $0x1c] sm:$0xf]
        %v544 = vld [vmem:[#allocation10 + $0x20] sm:$0xf]
        %v545 = vld [vmem:[#allocation10 + $0x24] sm:$0xf]
        %v546 = vld [vmem:[#allocation10 + $0x28] sm:$0xf]
        %v547 = vld [vmem:[#allocation10 + $0x2c] sm:$0xf]
        %v548 = vld [vmem:[#allocation10 + $0x30] sm:$0xf]
        %v549 = vld [vmem:[#allocation10 + $0x34] sm:$0xf]
        %v550 = vld [vmem:[#allocation10 + $0x38] sm:$0xf]
        %v551 = vld [vmem:[#allocation10 + $0x3c] sm:$0xf]
        %v552 = vld [vmem:[#allocation10 + $0x40] sm:$0xf]
        %v553 = vld [vmem:[#allocation10 + $0x44] sm:$0xf]
        %v554 = vld [vmem:[#allocation10 + $0x48] sm:$0xf]
        %v555 = vld [vmem:[#allocation10 + $0x4c] sm:$0xf]
        %v556 = vld [vmem:[#allocation10 + $0x50] sm:$0xf]
        %v557 = vld [vmem:[#allocation10 + $0x54] sm:$0xf]
        %v558 = vld [vmem:[#allocation10 + $0x58] sm:$0xf]
        %v559 = vld [vmem:[#allocation10 + $0x5c] sm:$0xf]
        %v560 = vld [vmem:[#allocation10 + $0x60] sm:$0xf]
        %v561 = vld [vmem:[#allocation10 + $0x64] sm:$0xf]
        %v562 = vld [vmem:[#allocation10 + $0x68] sm:$0xf]
        %v563 = vld [vmem:[#allocation10 + $0x6c] sm:$0xf]
        %v564 = vld [vmem:[#allocation10 + $0x70] sm:$0xf]
        %v565 = vld [vmem:[#allocation10 + $0x74] sm:$0xf]
        %v566 = vld [vmem:[#allocation10 + $0x78] sm:$0xf]
        %v567 = vld [vmem:[#allocation10 + $0x7c] sm:$0xf]
        %v568 = vld [vmem:[%s7] sm:$0x1]
        %v570 = vlaneseq
        %v571 = vshrl.u32 %v570, 7
        %v572 = vsub.s32 0, %v571
        %v573 = vrot.slane %v568, %v572
        %v607 = vunpack.c.l.b16 %v536
        %v608 = vunpack.c.l.b16 %v537
        %v609 = vunpack.c.l.b16 %v538
        %v610 = vunpack.c.l.b16 %v539
        %v611 = vunpack.c.l.b16 %v540
        %v612 = vunpack.c.l.b16 %v541
        %v613 = vunpack.c.l.b16 %v542
        %v614 = vunpack.c.l.b16 %v543
        %v615 = vunpack.c.l.b16 %v544
        %v616 = vunpack.c.l.b16 %v545
        %v617 = vunpack.c.l.b16 %v546
        %v618 = vunpack.c.l.b16 %v547
        %v619 = vunpack.c.l.b16 %v548
        %v620 = vunpack.c.l.b16 %v549
        %v621 = vunpack.c.l.b16 %v550
        %v622 = vunpack.c.l.b16 %v551
        %v623 = vunpack.c.l.b16 %v552
        %v624 = vunpack.c.l.b16 %v553
        %v625 = vunpack.c.l.b16 %v554
        %v626 = vunpack.c.l.b16 %v555
        %v627 = vunpack.c.l.b16 %v556
        %v628 = vunpack.c.l.b16 %v557
        %v629 = vunpack.c.l.b16 %v558
        %v630 = vunpack.c.l.b16 %v559
        %v631 = vunpack.c.l.b16 %v560
        %v632 = vunpack.c.l.b16 %v561
        %v633 = vunpack.c.l.b16 %v562
        %v634 = vunpack.c.l.b16 %v563
        %v635 = vunpack.c.l.b16 %v564
        %v636 = vunpack.c.l.b16 %v565
        %v637 = vunpack.c.l.b16 %v566
        %v638 = vunpack.c.l.b16 %v567
        %v639 = vpack.c.b16 %v608, %v607
        %v640 = vpack.c.b16 %v610, %v609
        %v641 = vpack.c.b16 %v612, %v611
        %v642 = vpack.c.b16 %v614, %v613
        %v643 = vpack.c.b16 %v616, %v615
        %v644 = vpack.c.b16 %v618, %v617
        %v645 = vpack.c.b16 %v620, %v619
        %v646 = vpack.c.b16 %v622, %v621
        %v647 = vpack.c.b16 %v624, %v623
        %v648 = vpack.c.b16 %v626, %v625
        %v649 = vpack.c.b16 %v628, %v627
        %v650 = vpack.c.b16 %v630, %v629
        %v651 = vpack.c.b16 %v632, %v631
        %v652 = vpack.c.b16 %v634, %v633
        %v653 = vpack.c.b16 %v636, %v635
        %v654 = vpack.c.b16 %v638, %v637
        %671 = vmatprep.subr.bf16.mxu0 0
        %672 = vmatpush1.bf16.msra.mxu0 %v646
        %673 = vmatprep.subr.bf16.mxu0 0
        %674 = vmatpush1.bf16.msra.mxu0 %v645
        %675 = vmatprep.subr.bf16.mxu0 0
        %676 = vmatpush1.bf16.msra.mxu0 %v644
        %677 = vmatprep.subr.bf16.mxu0 0
        %678 = vmatpush1.bf16.msra.mxu0 %v643
        %679 = vmatprep.subr.bf16.mxu0 0
        %680 = vmatpush1.bf16.msra.mxu0 %v642
        %681 = vmatprep.subr.bf16.mxu0 0
        %682 = vmatpush1.bf16.msra.mxu0 %v641
        %683 = vmatprep.subr.bf16.mxu0 0
        %684 = vmatpush1.bf16.msra.mxu0 %v640
        %685 = vmatprep.subr.bf16.mxu0 0
        %686 = vmatpush1.bf16.msra.mxu0 %v639
        %687 = vmatprep.subr.bf16.mxu0 0
        %688 = vmatpush2.bf16.msra.mxu0 %v654
        %689 = vmatprep.subr.bf16.mxu0 0
        %690 = vmatpush2.bf16.msra.mxu0 %v653
        %691 = vmatprep.subr.bf16.mxu0 0
        %692 = vmatpush2.bf16.msra.mxu0 %v652
        %693 = vmatprep.subr.bf16.mxu0 0
        %694 = vmatpush2.bf16.msra.mxu0 %v651
        %695 = vmatprep.subr.bf16.mxu0 0
        %696 = vmatpush2.bf16.msra.mxu0 %v650
        %697 = vmatprep.subr.bf16.mxu0 0
        %698 = vmatpush2.bf16.msra.mxu0 %v649
        %699 = vmatprep.subr.bf16.mxu0 0
        %700 = vmatpush2.bf16.msra.mxu0 %v648
        %701 = vmatprep.subr.bf16.mxu0 0
        %702 = vmatpush2.bf16.msra.mxu0 %v647
        %703 = vmatprep.mubr.bf16.mxu0 %v535
        %704 = vmatmul.mubr.bf16.gmra.mxu0 %v534
        %v705 = vpop.f32.mrf.mxu0
        %v706 = vadd.f32 %v573, %v705
        %v707 = vpop.f32.mrf.mxu0
        %v708 = vpop.f32.mrf.mxu0
        %v709 = vpop.f32.mrf.mxu0
        %710 = vdwg.mxu0
        %711 = vst [vmem:[%s400] sm:$0xff] %v706
        %s712 = sand.u32 %s215, 1
        %s713 = scalar_lea.sflag [#allocation4], %s712
        %s714 = sand.u32 %s215, 1
        %s715 = smul.addr %s714, 8
        %s716 = scalar_lea.vmem [#allocation11], %s715
        // Predicated region
        $region73: #{tpu_custom_call.1} parent=51 // pred_check
          %p717 = pneg %p225
        $region74: #{tpu_custom_call.1} parent=51 // pred_check_branch
          %719 = sbr.rel (%p717) target = $region76
        $region75: #{tpu_custom_call.1} parent=51 // pred_region
          %s721 = ssub.s32 128, 128
          %722 = vsyncadd %s713, %s721
          %s723 = smul.addr %s29, 128
          %s724 = scalar_lea.hbm %s8, %s723
          %s726 = sshll.u32 %s716, 4
          %s727 = int_to_ptr.vmem [resolvable:$true] %s726
          %729 = dma.vmem_to_hbm [thread:$0]  %s727, 128, %s724, %s713
        $region76: #{tpu_custom_call.1} parent=51 // pred_fallthru
          _
      $region52: #{tpu_custom_call.1} parent=5 // pred_fallthru
        _
      %p730 = scmp.le.s32.totalorder 2, %s24
      // Predicated region
      $region77: #{tpu_custom_call.1} parent=5 // pred_check
        %p731 = pneg %p730
      $region78: #{tpu_custom_call.1} parent=5 // pred_check_branch
        %733 = sbr.rel (%p731) target = $region80
      $region79: #{tpu_custom_call.1} parent=5 // pred_region
        %s734 = ssub.s32 %s24, 2
        // Predicated region
        $region81: #{tpu_custom_call.1} parent=79 // pred_check
          %p735 = pneg %p231
        $region82: #{tpu_custom_call.1} parent=79 // pred_check_branch
          %737 = sbr.rel (%p735) target = $region84
        $region83: #{tpu_custom_call.1} parent=79 // pred_region
          %s738 = sand.u32 %s216, 1
          %s739 = scalar_lea.sflag [#allocation4], %s738
          %s740 = sand.u32 %s216, 1
          %s741 = smul.addr %s740, 8
          %s742 = scalar_lea.vmem [#allocation11], %s741
          %743 = dma.done %s739, 128
        $region84: #{tpu_custom_call.1} parent=79 // pred_fallthru
          _
      $region80: #{tpu_custom_call.1} parent=5 // pred_fallthru
        _
    $region6: #{tpu_custom_call.1} parent=1 // loop_footer
      %s28 = sadd.s32 1, %s24
    $region7: #{tpu_custom_call.1} parent=1 // loop_footer_branch
      %23 = sbr.rel target = $region3
    $region8: #{tpu_custom_call.1} parent=1 // loop_exit
      _
    %744 = vsyncpa [#allocation3], 1
    %s745 = scalar_lea.sflag [#allocation3], 1
    %746 = vsyncpa %s745, 1
    %747 = vsyncpa [#allocation6], 1
    %s748 = scalar_lea.sflag [#allocation6], 1
    %749 = vsyncpa %s748, 1
    %750 = vsyncpa [#allocation9], 1
    %751 = vsyncpa [#allocation4], 1
    %s752 = scalar_lea.sflag [#allocation4], 1
    %753 = vsyncpa %s752, 1

</llo_original>
